<compile_context>
chip_gen: v6e
topology: v6e:2x2x1
jax: 0.10.0
libtpu: 0.0.40
codegen_flags: <defaults>
</compile_context>

<pallas_src>
import functools

import jax
import jax.numpy as jnp
import numpy as np
from jax.experimental import pallas as pl
from jax.experimental.pallas import tpu as pltpu

KERNEL_WIDTH = 5  # CS224N CNN kernel size


def char_cnn_highway_kernel(ids_ref, m_ref, bc_ref, wp_ref, bp_ref,
                            wg_ref, bg_ref, o_ref):
    """One tile of TN words: fused char-embed+conv1d, relu/max-over-time, highway.

    ids_ref : (L, TN)    int32  char ids, time-major
    m_ref   : (K, V, E)  f32    fused tables  M[k] = char_emb @ w_conv[:, :, k].T
    bc_ref  : (1, E)            conv bias
    wp/bp, wg/bg               highway proj / gate params (E, E), (1, E)
    o_ref   : (TN, E)
    """
    ids = ids_ref[...]                              # (L, TN) int32
    L, TN = ids.shape
    K, V, E = m_ref.shape
    T = L - K + 1                                   # valid-conv output length

    # --- char embedding lookup fused with the conv contraction -------------
    # One-hot over the char vocab, time-major: per-k conv window is a free
    # leading-dim slice (no lane concatenate / unfold, no (N,L,C) intermediate).
    vocab_iota = jax.lax.broadcasted_iota(jnp.int32, (L, TN, V), 2)
    onehot = (ids[:, :, None] == vocab_iota).astype(jnp.float32)   # (L, TN, V)

    # conv[n, t, e] = sum_k M[k][ids[n, t+k], e]
    acc = jnp.zeros((T * TN, E), jnp.float32)
    for k in range(K):                               # K = 5, unrolled at trace
        slab = onehot[k:k + T].reshape(T * TN, V)    # layout-trivial (TN % 8 == 0)
        acc = acc + jnp.dot(slab, m_ref[k], preferred_element_type=jnp.float32)

    # --- ReLU o max-over-time; bias & ReLU hoisted out of the T axis --------
    m = jnp.max(acc.reshape(T, TN, E), axis=0)       # (TN, E), VPU-only reduce
    h = jnp.maximum(m + bc_ref[...], 0.0)

    # --- Highway -------------------------------------------------------------
    proj = jnp.maximum(
        jnp.dot(h, wp_ref[...], preferred_element_type=jnp.float32) + bp_ref[...],
        0.0)
    gate = jax.nn.sigmoid(
        jnp.dot(h, wg_ref[...], preferred_element_type=jnp.float32) + bg_ref[...])
    out = gate * proj + (1.0 - gate) * h

    o_ref[...] = out.astype(o_ref.dtype)


def _round_up(x, m):
    return (x + m - 1) // m * m


@functools.partial(jax.jit, static_argnames=("tile_n",))
def model_embeddings_forward(input_ids, params, *, tile_n=256):
    """input_ids: (sent_len, batch, max_word_len) int32 -> (sent_len, batch, E)."""
    S, B, L = input_ids.shape
    char_emb = params["char_emb"]                   # (V, C)
    V = char_emb.shape[0]
    E = params["b_conv"].shape[0]
    K = KERNEL_WIDTH

    # --- glue: fuse char-embedding table into the conv weights --------------
    # M[k, v, e] = sum_c char_emb[v, c] * w_conv[e, c, k]   (tiny (K, V, E))
    m_tab = jnp.einsum("vc,eck->kve", char_emb,
                       params["w_conv"]).astype(jnp.float32)
    bc = params["b_conv"].reshape(1, E).astype(jnp.float32)
    wp = params["w_proj"].T.astype(jnp.float32)
    bp = params["b_proj"].reshape(1, E).astype(jnp.float32)
    wg = params["w_gate"].T.astype(jnp.float32)
    bg = params["b_gate"].reshape(1, E).astype(jnp.float32)

    # --- glue: ids -> time-major (L, N), pad N to the word tile --------------
    N = S * B
    ids = input_ids.reshape(N, L).T                 # (L, N) int32
    if N >= tile_n:
        assert tile_n % 128 == 0, "multi-tile path needs lane-aligned tile_n"
        tn = tile_n
    else:
        tn = max(8, _round_up(N, 8))                # single-tile fallback, small N
    n_pad = _round_up(N, tn)
    if n_pad != N:
        ids = jnp.pad(ids, ((0, 0), (0, n_pad - N)))  # pad words (id 0); sliced off

    grid = (n_pad // tn,)

    out = pl.pallas_call(
        char_cnn_highway_kernel,
        out_shape=jax.ShapeDtypeStruct((n_pad, E), jnp.float32),
        grid_spec=pltpu.PrefetchScalarGridSpec(
            num_scalar_prefetch=0,
            grid=grid,
            in_specs=[
                pl.BlockSpec((L, tn), lambda i: (0, i)),       # ids tile (time-major)
                pl.BlockSpec((K, V, E), lambda i: (0, 0, 0)),  # fused emb*conv tables
                pl.BlockSpec((1, E), lambda i: (0, 0)),        # conv bias
                pl.BlockSpec((E, E), lambda i: (0, 0)),        # highway proj weight
                pl.BlockSpec((1, E), lambda i: (0, 0)),        # highway proj bias
                pl.BlockSpec((E, E), lambda i: (0, 0)),        # highway gate weight
                pl.BlockSpec((1, E), lambda i: (0, 0)),        # highway gate bias
            ],
            out_specs=pl.BlockSpec((tn, E), lambda i: (i, 0)),
        ),
        compiler_params=pltpu.CompilerParams(
            dimension_semantics=("parallel",),
            vmem_limit_bytes=32 * 1024 * 1024),
    )(ids, m_tab, bc, wp, bp, wg, bg)

    return out[:N].reshape(S, B, E)


def reference_forward(input_ids, params):
    """Pure-JAX reference mirroring the PyTorch module (eval mode)."""
    S, B, L = input_ids.shape
    C = params["char_emb"].shape[1]
    E = params["b_conv"].shape[0]
    data = params["char_emb"][input_ids].reshape(S * B, L, C)   # (N, L, C)
    x_ncw = jnp.transpose(data, (0, 2, 1))                      # (N, C, L)
    conv = jax.lax.conv_general_dilated(
        x_ncw, params["w_conv"], window_strides=(1,), padding="VALID",
        dimension_numbers=("NCH", "OIH", "NCH"))                # (N, E, T)
    conv = conv + params["b_conv"][None, :, None]
    h = jnp.max(jax.nn.relu(conv), axis=2)                      # (N, E)
    proj = jax.nn.relu(h @ params["w_proj"].T + params["b_proj"])
    gate = jax.nn.sigmoid(h @ params["w_gate"].T + params["b_gate"])
    out = gate * proj + (1.0 - gate) * h
    return out.reshape(S, B, E)


def init_params(key, vocab_size, char_embed_size, embed_size):
    ks = jax.random.split(key, 6)
    scale = 0.1
    return {
        "char_emb": scale * jax.random.normal(ks[0], (vocab_size, char_embed_size), jnp.float32),
        "w_conv": scale * jax.random.normal(ks[1], (embed_size, char_embed_size, KERNEL_WIDTH), jnp.float32),
        "b_conv": scale * jax.random.normal(ks[2], (embed_size,), jnp.float32),
        "w_proj": scale * jax.random.normal(ks[3], (embed_size, embed_size), jnp.float32),
        "b_proj": jnp.zeros((embed_size,), jnp.float32),
        "w_gate": scale * jax.random.normal(ks[4], (embed_size, embed_size), jnp.float32),
        "b_gate": jnp.zeros((embed_size,), jnp.float32),
    }


if __name__ == "__main__":
    key = jax.random.PRNGKey(0)
    k_param, k_in = jax.random.split(key)

    sent_len, batch, max_word_len = 8, 2, 21
    vocab_size = 30          # len(vocab.char2id)
    char_embed_size = 50     # fixed by the module
    embed_size = 32

    params = init_params(k_param, vocab_size, char_embed_size, embed_size)
    input_ids = jax.random.randint(
        k_in, (sent_len, batch, max_word_len), 0, vocab_size, dtype=jnp.int32)

    out = model_embeddings_forward(input_ids, params)
    out = jax.block_until_ready(out)

    ref = reference_forward(input_ids, params)
    assert out.shape == (sent_len, batch, embed_size)
    np.testing.assert_allclose(np.asarray(out), np.asarray(ref), rtol=1e-5, atol=1e-5)

    print("KERNEL_OK")
</pallas_src>

<mosaic_0001>
module attributes {stable_mosaic.version = 11 : i64} {
  func.func @char_cnn_highway_kernel(%arg0: i32, %arg1: memref<21x16xi32, #tpu.memory_space<vmem>>, %arg2: memref<5x30x32xf32, #tpu.memory_space<vmem>>, %arg3: memref<1x32xf32, #tpu.memory_space<vmem>>, %arg4: memref<32x32xf32, #tpu.memory_space<vmem>>, %arg5: memref<1x32xf32, #tpu.memory_space<vmem>>, %arg6: memref<32x32xf32, #tpu.memory_space<vmem>>, %arg7: memref<1x32xf32, #tpu.memory_space<vmem>>, %arg8: memref<16x32xf32, #tpu.memory_space<vmem>>) attributes {dimension_semantics = [#tpu.dimension_semantics<parallel>], iteration_bounds = array<i64: 1>, scalar_prefetch = 0 : i64, scratch_operands = 0 : i64, tpu.core_type = #tpu.core_type<tc>, window_params = [{transform_indices = @transform_0, window_bounds = array<i64: 21, 16>}, {pipeline_mode = #tpu.pipeline_mode<synchronous>, transform_indices = @transform_1, window_bounds = array<i64: 5, 30, 32>}, {pipeline_mode = #tpu.pipeline_mode<synchronous>, transform_indices = @transform_2, window_bounds = array<i64: 1, 32>}, {pipeline_mode = #tpu.pipeline_mode<synchronous>, transform_indices = @transform_3, window_bounds = array<i64: 32, 32>}, {pipeline_mode = #tpu.pipeline_mode<synchronous>, transform_indices = @transform_4, window_bounds = array<i64: 1, 32>}, {pipeline_mode = #tpu.pipeline_mode<synchronous>, transform_indices = @transform_5, window_bounds = array<i64: 32, 32>}, {pipeline_mode = #tpu.pipeline_mode<synchronous>, transform_indices = @transform_6, window_bounds = array<i64: 1, 32>}, {transform_indices = @transform_7, window_bounds = array<i64: 16, 32>}]} {
    %c0 = arith.constant 0 : index
    %c0_0 = arith.constant 0 : index
    %0 = vector.load %arg1[%c0, %c0_0] : memref<21x16xi32, #tpu.memory_space<vmem>>, vector<21x16xi32>
    %1 = tpu.iota {dimensions = array<i32: 2>} : vector<21x16x30xi32>
    %2 = vector.shape_cast %0 : vector<21x16xi32> to vector<21x16x1xi32>
    %3 = vector.broadcast %2 : vector<21x16x1xi32> to vector<21x16x30xi32>
    %4 = arith.cmpi eq, %3, %1 : vector<21x16x30xi32>
    %5 = arith.extui %4 : vector<21x16x30xi1> to vector<21x16x30xi32>
    %6 = arith.sitofp %5 : vector<21x16x30xi32> to vector<21x16x30xf32>
    %cst = arith.constant 0.000000e+00 : f32
    %7 = vector.broadcast %cst : f32 to vector<272x32xf32>
    %8 = vector.extract_strided_slice %6 {offsets = [0, 0, 0], sizes = [17, 16, 30], strides = [1, 1, 1]} : vector<21x16x30xf32> to vector<17x16x30xf32>
    %9 = vector.shape_cast %8 : vector<17x16x30xf32> to vector<272x30xf32>
    %c0_1 = arith.constant 0 : index
    %c0_2 = arith.constant 0 : index
    %c0_3 = arith.constant 0 : index
    %10 = vector.load %arg2[%c0_1, %c0_2, %c0_3] : memref<5x30x32xf32, #tpu.memory_space<vmem>>, vector<1x30x32xf32>
    %11 = vector.shape_cast %10 : vector<1x30x32xf32> to vector<30x32xf32>
    %cst_4 = arith.constant dense<0.000000e+00> : vector<272x32xf32>
    %12 = tpu.matmul %9, %11, %cst_4 {dimension_numbers = #tpu.dot_dimension_numbers<[1], [0], [0], [1], [0, 0, 1, 1], [], []>} : vector<272x30xf32>, vector<30x32xf32>, vector<272x32xf32> -> vector<272x32xf32>
    %13 = arith.addf %7, %12 : vector<272x32xf32>
    %14 = vector.extract_strided_slice %6 {offsets = [1, 0, 0], sizes = [17, 16, 30], strides = [1, 1, 1]} : vector<21x16x30xf32> to vector<17x16x30xf32>
    %15 = vector.shape_cast %14 : vector<17x16x30xf32> to vector<272x30xf32>
    %c1 = arith.constant 1 : index
    %c0_5 = arith.constant 0 : index
    %c0_6 = arith.constant 0 : index
    %16 = vector.load %arg2[%c1, %c0_5, %c0_6] : memref<5x30x32xf32, #tpu.memory_space<vmem>>, vector<1x30x32xf32>
    %17 = vector.shape_cast %16 : vector<1x30x32xf32> to vector<30x32xf32>
    %cst_7 = arith.constant dense<0.000000e+00> : vector<272x32xf32>
    %18 = tpu.matmul %15, %17, %cst_7 {dimension_numbers = #tpu.dot_dimension_numbers<[1], [0], [0], [1], [0, 0, 1, 1], [], []>} : vector<272x30xf32>, vector<30x32xf32>, vector<272x32xf32> -> vector<272x32xf32>
    %19 = arith.addf %13, %18 : vector<272x32xf32>
    %20 = vector.extract_strided_slice %6 {offsets = [2, 0, 0], sizes = [17, 16, 30], strides = [1, 1, 1]} : vector<21x16x30xf32> to vector<17x16x30xf32>
    %21 = vector.shape_cast %20 : vector<17x16x30xf32> to vector<272x30xf32>
    %c2 = arith.constant 2 : index
    %c0_8 = arith.constant 0 : index
    %c0_9 = arith.constant 0 : index
    %22 = vector.load %arg2[%c2, %c0_8, %c0_9] : memref<5x30x32xf32, #tpu.memory_space<vmem>>, vector<1x30x32xf32>
    %23 = vector.shape_cast %22 : vector<1x30x32xf32> to vector<30x32xf32>
    %cst_10 = arith.constant dense<0.000000e+00> : vector<272x32xf32>
    %24 = tpu.matmul %21, %23, %cst_10 {dimension_numbers = #tpu.dot_dimension_numbers<[1], [0], [0], [1], [0, 0, 1, 1], [], []>} : vector<272x30xf32>, vector<30x32xf32>, vector<272x32xf32> -> vector<272x32xf32>
    %25 = arith.addf %19, %24 : vector<272x32xf32>
    %26 = vector.extract_strided_slice %6 {offsets = [3, 0, 0], sizes = [17, 16, 30], strides = [1, 1, 1]} : vector<21x16x30xf32> to vector<17x16x30xf32>
    %27 = vector.shape_cast %26 : vector<17x16x30xf32> to vector<272x30xf32>
    %c3 = arith.constant 3 : index
    %c0_11 = arith.constant 0 : index
    %c0_12 = arith.constant 0 : index
    %28 = vector.load %arg2[%c3, %c0_11, %c0_12] : memref<5x30x32xf32, #tpu.memory_space<vmem>>, vector<1x30x32xf32>
    %29 = vector.shape_cast %28 : vector<1x30x32xf32> to vector<30x32xf32>
    %cst_13 = arith.constant dense<0.000000e+00> : vector<272x32xf32>
    %30 = tpu.matmul %27, %29, %cst_13 {dimension_numbers = #tpu.dot_dimension_numbers<[1], [0], [0], [1], [0, 0, 1, 1], [], []>} : vector<272x30xf32>, vector<30x32xf32>, vector<272x32xf32> -> vector<272x32xf32>
    %31 = arith.addf %25, %30 : vector<272x32xf32>
    %32 = vector.extract_strided_slice %6 {offsets = [4, 0, 0], sizes = [17, 16, 30], strides = [1, 1, 1]} : vector<21x16x30xf32> to vector<17x16x30xf32>
    %33 = vector.shape_cast %32 : vector<17x16x30xf32> to vector<272x30xf32>
    %c4 = arith.constant 4 : index
    %c0_14 = arith.constant 0 : index
    %c0_15 = arith.constant 0 : index
    %34 = vector.load %arg2[%c4, %c0_14, %c0_15] : memref<5x30x32xf32, #tpu.memory_space<vmem>>, vector<1x30x32xf32>
    %35 = vector.shape_cast %34 : vector<1x30x32xf32> to vector<30x32xf32>
    %cst_16 = arith.constant dense<0.000000e+00> : vector<272x32xf32>
    %36 = tpu.matmul %33, %35, %cst_16 {dimension_numbers = #tpu.dot_dimension_numbers<[1], [0], [0], [1], [0, 0, 1, 1], [], []>} : vector<272x30xf32>, vector<30x32xf32>, vector<272x32xf32> -> vector<272x32xf32>
    %37 = arith.addf %31, %36 : vector<272x32xf32>
    %38 = vector.shape_cast %37 : vector<272x32xf32> to vector<17x16x32xf32>
    %cst_17 = arith.constant dense<0xFF800000> : vector<16x32xf32>
    %39 = vector.multi_reduction <maximumf>, %38, %cst_17 [0] : vector<17x16x32xf32> to vector<16x32xf32>
    %c0_18 = arith.constant 0 : index
    %c0_19 = arith.constant 0 : index
    %40 = vector.load %arg3[%c0_18, %c0_19] : memref<1x32xf32, #tpu.memory_space<vmem>>, vector<1x32xf32>
    %41 = vector.broadcast %40 : vector<1x32xf32> to vector<16x32xf32>
    %42 = arith.addf %39, %41 : vector<16x32xf32>
    %cst_20 = arith.constant 0.000000e+00 : f32
    %43 = vector.broadcast %cst_20 : f32 to vector<16x32xf32>
    %44 = arith.maximumf %42, %43 : vector<16x32xf32>
    %c0_21 = arith.constant 0 : index
    %c0_22 = arith.constant 0 : index
    %45 = vector.load %arg4[%c0_21, %c0_22] : memref<32x32xf32, #tpu.memory_space<vmem>>, vector<32x32xf32>
    %cst_23 = arith.constant dense<0.000000e+00> : vector<16x32xf32>
    %46 = tpu.matmul %44, %45, %cst_23 {dimension_numbers = #tpu.dot_dimension_numbers<[1], [0], [0], [1], [0, 0, 1, 1], [], []>} : vector<16x32xf32>, vector<32x32xf32>, vector<16x32xf32> -> vector<16x32xf32>
    %c0_24 = arith.constant 0 : index
    %c0_25 = arith.constant 0 : index
    %47 = vector.load %arg5[%c0_24, %c0_25] : memref<1x32xf32, #tpu.memory_space<vmem>>, vector<1x32xf32>
    %48 = vector.broadcast %47 : vector<1x32xf32> to vector<16x32xf32>
    %49 = arith.addf %46, %48 : vector<16x32xf32>
    %cst_26 = arith.constant 0.000000e+00 : f32
    %50 = vector.broadcast %cst_26 : f32 to vector<16x32xf32>
    %51 = arith.maximumf %49, %50 : vector<16x32xf32>
    %c0_27 = arith.constant 0 : index
    %c0_28 = arith.constant 0 : index
    %52 = vector.load %arg6[%c0_27, %c0_28] : memref<32x32xf32, #tpu.memory_space<vmem>>, vector<32x32xf32>
    %cst_29 = arith.constant dense<0.000000e+00> : vector<16x32xf32>
    %53 = tpu.matmul %44, %52, %cst_29 {dimension_numbers = #tpu.dot_dimension_numbers<[1], [0], [0], [1], [0, 0, 1, 1], [], []>} : vector<16x32xf32>, vector<32x32xf32>, vector<16x32xf32> -> vector<16x32xf32>
    %c0_30 = arith.constant 0 : index
    %c0_31 = arith.constant 0 : index
    %54 = vector.load %arg7[%c0_30, %c0_31] : memref<1x32xf32, #tpu.memory_space<vmem>>, vector<1x32xf32>
    %55 = vector.broadcast %54 : vector<1x32xf32> to vector<16x32xf32>
    %56 = arith.addf %53, %55 : vector<16x32xf32>
    %57 = arith.negf %56 : vector<16x32xf32>
    %58 = math.exp %57 : vector<16x32xf32>
    %cst_32 = arith.constant 1.000000e+00 : f32
    %59 = vector.broadcast %cst_32 : f32 to vector<16x32xf32>
    %60 = arith.addf %59, %58 : vector<16x32xf32>
    %61 = arith.divf %59, %60 : vector<16x32xf32>
    %62 = arith.mulf %61, %51 : vector<16x32xf32>
    %cst_33 = arith.constant 1.000000e+00 : f32
    %63 = vector.broadcast %cst_33 : f32 to vector<16x32xf32>
    %64 = arith.subf %63, %61 : vector<16x32xf32>
    %65 = arith.mulf %64, %44 : vector<16x32xf32>
    %66 = arith.addf %62, %65 : vector<16x32xf32>
    %c0_34 = arith.constant 0 : index
    %c0_35 = arith.constant 0 : index
    %67 = vector.load %arg8[%c0_34, %c0_35] : memref<16x32xf32, #tpu.memory_space<vmem>>, vector<16x32xf32>
    tpu.vector_store %arg8[%c0_34, %c0_35], %66 {strides = array<i32>} : memref<16x32xf32, #tpu.memory_space<vmem>>, vector<16x32xf32>,
    return
  }
  func.func @transform_0(%arg0: i32) -> (i32, i32) {
    %c0_i32 = arith.constant 0 : i32
    %c0_i32_0 = arith.constant 0 : i32
    return %c0_i32, %arg0 : i32, i32
  }
  func.func @transform_1(%arg0: i32) -> (i32, i32, i32) {
    %c0_i32 = arith.constant 0 : i32
    %c0_i32_0 = arith.constant 0 : i32
    %c0_i32_1 = arith.constant 0 : i32
    %c0_i32_2 = arith.constant 0 : i32
    return %c0_i32, %c0_i32_0, %c0_i32_1 : i32, i32, i32
  }
  func.func @transform_2(%arg0: i32) -> (i32, i32) {
    %c0_i32 = arith.constant 0 : i32
    %c0_i32_0 = arith.constant 0 : i32
    %c0_i32_1 = arith.constant 0 : i32
    return %c0_i32, %c0_i32_0 : i32, i32
  }
  func.func @transform_3(%arg0: i32) -> (i32, i32) {
    %c0_i32 = arith.constant 0 : i32
    %c0_i32_0 = arith.constant 0 : i32
    %c0_i32_1 = arith.constant 0 : i32
    return %c0_i32, %c0_i32_0 : i32, i32
  }
  func.func @transform_4(%arg0: i32) -> (i32, i32) {
    %c0_i32 = arith.constant 0 : i32
    %c0_i32_0 = arith.constant 0 : i32
    %c0_i32_1 = arith.constant 0 : i32
    return %c0_i32, %c0_i32_0 : i32, i32
  }
  func.func @transform_5(%arg0: i32) -> (i32, i32) {
    %c0_i32 = arith.constant 0 : i32
    %c0_i32_0 = arith.constant 0 : i32
    %c0_i32_1 = arith.constant 0 : i32
    return %c0_i32, %c0_i32_0 : i32, i32
  }
  func.func @transform_6(%arg0: i32) -> (i32, i32) {
    %c0_i32 = arith.constant 0 : i32
    %c0_i32_0 = arith.constant 0 : i32
    %c0_i32_1 = arith.constant 0 : i32
    return %c0_i32, %c0_i32_0 : i32, i32
  }
  func.func @transform_7(%arg0: i32) -> (i32, i32) {
    %c0_i32 = arith.constant 0 : i32
    %c0_i32_0 = arith.constant 0 : i32
    return %arg0, %c0_i32 : i32, i32
  }
}

</mosaic_0001>

<llo_original>
// kernel: model_embeddings_forward.1
$region0: #{model_embeddings_forward.1}
  #allocation0 [shape = 'u32[]', space=smem, size = 0x4, offset = 0x4, fixed_abs, tag = 'smem constant byte address 0x4 - core index']
  #allocation1 [shape = 'u32[144,128]{1,0:T(1,128)}', space=vmem, size = 0x12000, scoped, tag = 'internal scratch']
  %s0 = inlined_call_operand.vmem [shape: s32[21,16], index: 0, kind: input, shape index: {}]
  %s1 = inlined_call_operand.vmem [shape: f32[5,30,32], index: 1, kind: input, shape index: {}]
  %s2 = inlined_call_operand.vmem [shape: f32[1,32], index: 2, kind: input, shape index: {}]
  %s3 = inlined_call_operand.vmem [shape: f32[32,32], index: 3, kind: input, shape index: {}]
  %s4 = inlined_call_operand.vmem [shape: f32[1,32], index: 4, kind: input, shape index: {}]
  %s5 = inlined_call_operand.vmem [shape: f32[32,32], index: 5, kind: input, shape index: {}]
  %s6 = inlined_call_operand.vmem [shape: f32[1,32], index: 6, kind: input, shape index: {}]
  %s7 = inlined_call_operand.hbm [shape: f32[16,32], index: 7, kind: output, shape index: {}]
  %s8 = sld [smem:[#allocation0]]
  $region38: #{model_embeddings_forward.1} parent=0
    _
  %s10 = ssub.s32 1, %s8
  %s11 = scalar_select 0, %s10, %s8
  $region1: #{model_embeddings_forward.1} parent=0
    #allocation2 [shape = 'u8[8192]{0}', space=vmem, size = 0x2000, scoped, tag = 'output window, operand 0, single buffered']
    #allocation3 [shape = 's32[1]{0}', space=sflag, size = 0x4, scoped, tag = 'scoped memory for model_embeddings_forward.1']
    %12 = vsyncpa [#allocation3], 0
    // Predicated region
    $region2: #{model_embeddings_forward.1} parent=1 // pred_check
      _
    $region3: #{model_embeddings_forward.1} parent=1 // pred_check_branch
      %14 = sbr.rel (0) target = $region5
    $region4: #{model_embeddings_forward.1} parent=1 // pred_region
      _
    $region5: #{model_embeddings_forward.1} parent=1 // pred_fallthru
      _
    // Predicated region
    $region6: #{model_embeddings_forward.1} parent=1 // pred_check
      _
    $region7: #{model_embeddings_forward.1} parent=1 // pred_check_branch
      %16 = sbr.rel (0) target = $region9
    $region8: #{model_embeddings_forward.1} parent=1 // pred_region
      _
    $region9: #{model_embeddings_forward.1} parent=1 // pred_fallthru
      _
    // Predicated region
    $region10: #{model_embeddings_forward.1} parent=1 // pred_check
      _
    $region11: #{model_embeddings_forward.1} parent=1 // pred_check_branch
      %18 = sbr.rel (0) target = $region13
    $region12: #{model_embeddings_forward.1} parent=1 // pred_region
      _
    $region13: #{model_embeddings_forward.1} parent=1 // pred_fallthru
      _
    // Predicated region
    $region14: #{model_embeddings_forward.1} parent=1 // pred_check
      _
    $region15: #{model_embeddings_forward.1} parent=1 // pred_check_branch
      %20 = sbr.rel (0) target = $region17
    $region16: #{model_embeddings_forward.1} parent=1 // pred_region
      _
    $region17: #{model_embeddings_forward.1} parent=1 // pred_fallthru
      _
    // Predicated region
    $region18: #{model_embeddings_forward.1} parent=1 // pred_check
      _
    $region19: #{model_embeddings_forward.1} parent=1 // pred_check_branch
      %22 = sbr.rel (0) target = $region21
    $region20: #{model_embeddings_forward.1} parent=1 // pred_region
      _
    $region21: #{model_embeddings_forward.1} parent=1 // pred_fallthru
      _
    // Predicated region
    $region22: #{model_embeddings_forward.1} parent=1 // pred_check
      _
    $region23: #{model_embeddings_forward.1} parent=1 // pred_check_branch
      %24 = sbr.rel (0) target = $region25
    $region24: #{model_embeddings_forward.1} parent=1 // pred_region
      _
    $region25: #{model_embeddings_forward.1} parent=1 // pred_fallthru
      _
    // Predicated region
    $region26: #{model_embeddings_forward.1} parent=1 // pred_check
      _
    $region27: #{model_embeddings_forward.1} parent=1 // pred_check_branch
      %26 = sbr.rel (0) target = $region29
    $region28: #{model_embeddings_forward.1} parent=1 // pred_region
      _
    $region29: #{model_embeddings_forward.1} parent=1 // pred_fallthru
      _
    %v27 = vld [vmem:[%s0] sm:$0xff]
    %v28 = vld [vmem:[%s0 + $0x8] sm:$0xff]
    %v29 = vld [vmem:[%s0 + $0x10] sm:$0x1f]
    %v30 = vlaneseq
    %v31 = vand.u32 %v30, 127
    %v32 = vlaneseq
    %v33 = vshrl.u32 %v32, 7
    %v34 = vsub.s32 0, %v33
    %v35 = vrot.slane %v27, %v34
    %37 = vbcast.lane.b32.xlu0 %v35, 256
    %v38 = vpop.permute.xlu0 %37
    %s40 = sor.u32 256, 8
    %41 = vbcast.lane.b32.xlu0 %v35, %s40
    %v42 = vpop.permute.xlu0 %41
    %v43 = vlaneseq
    %v44 = vshrl.u32 %v43, 7
    %v45 = vsub.s32 1, %v44
    %v46 = vrot.slane %v27, %v45
    %48 = vbcast.lane.b32.xlu0 %v46, 256
    %v49 = vpop.permute.xlu0 %48
    %s51 = sor.u32 256, 8
    %52 = vbcast.lane.b32.xlu0 %v46, %s51
    %v53 = vpop.permute.xlu0 %52
    %v54 = vlaneseq
    %v55 = vshrl.u32 %v54, 7
    %v56 = vsub.s32 2, %v55
    %v57 = vrot.slane %v27, %v56
    %59 = vbcast.lane.b32.xlu0 %v57, 256
    %v60 = vpop.permute.xlu0 %59
    %s62 = sor.u32 256, 8
    %63 = vbcast.lane.b32.xlu0 %v57, %s62
    %v64 = vpop.permute.xlu0 %63
    %v65 = vlaneseq
    %v66 = vshrl.u32 %v65, 7
    %v67 = vsub.s32 3, %v66
    %v68 = vrot.slane %v27, %v67
    %70 = vbcast.lane.b32.xlu0 %v68, 256
    %v71 = vpop.permute.xlu0 %70
    %s73 = sor.u32 256, 8
    %74 = vbcast.lane.b32.xlu0 %v68, %s73
    %v75 = vpop.permute.xlu0 %74
    %v76 = vlaneseq
    %v77 = vshrl.u32 %v76, 7
    %v78 = vsub.s32 4, %v77
    %v79 = vrot.slane %v27, %v78
    %81 = vbcast.lane.b32.xlu0 %v79, 256
    %v82 = vpop.permute.xlu0 %81
    %s84 = sor.u32 256, 8
    %85 = vbcast.lane.b32.xlu0 %v79, %s84
    %v86 = vpop.permute.xlu0 %85
    %v87 = vlaneseq
    %v88 = vshrl.u32 %v87, 7
    %v89 = vsub.s32 5, %v88
    %v90 = vrot.slane %v27, %v89
    %92 = vbcast.lane.b32.xlu0 %v90, 256
    %v93 = vpop.permute.xlu0 %92
    %s95 = sor.u32 256, 8
    %96 = vbcast.lane.b32.xlu0 %v90, %s95
    %v97 = vpop.permute.xlu0 %96
    %v98 = vlaneseq
    %v99 = vshrl.u32 %v98, 7
    %v100 = vsub.s32 6, %v99
    %v101 = vrot.slane %v27, %v100
    %103 = vbcast.lane.b32.xlu0 %v101, 256
    %v104 = vpop.permute.xlu0 %103
    %s106 = sor.u32 256, 8
    %107 = vbcast.lane.b32.xlu0 %v101, %s106
    %v108 = vpop.permute.xlu0 %107
    %v109 = vlaneseq
    %v110 = vshrl.u32 %v109, 7
    %v111 = vsub.s32 7, %v110
    %v112 = vrot.slane %v27, %v111
    %114 = vbcast.lane.b32.xlu0 %v112, 256
    %v115 = vpop.permute.xlu0 %114
    %s117 = sor.u32 256, 8
    %118 = vbcast.lane.b32.xlu0 %v112, %s117
    %v119 = vpop.permute.xlu0 %118
    %v120 = vlaneseq
    %v121 = vshrl.u32 %v120, 7
    %v122 = vsub.s32 0, %v121
    %v123 = vrot.slane %v28, %v122
    %125 = vbcast.lane.b32.xlu0 %v123, 256
    %v126 = vpop.permute.xlu0 %125
    %s128 = sor.u32 256, 8
    %129 = vbcast.lane.b32.xlu0 %v123, %s128
    %v130 = vpop.permute.xlu0 %129
    %v131 = vlaneseq
    %v132 = vshrl.u32 %v131, 7
    %v133 = vsub.s32 1, %v132
    %v134 = vrot.slane %v28, %v133
    %136 = vbcast.lane.b32.xlu0 %v134, 256
    %v137 = vpop.permute.xlu0 %136
    %s139 = sor.u32 256, 8
    %140 = vbcast.lane.b32.xlu0 %v134, %s139
    %v141 = vpop.permute.xlu0 %140
    %v142 = vlaneseq
    %v143 = vshrl.u32 %v142, 7
    %v144 = vsub.s32 2, %v143
    %v145 = vrot.slane %v28, %v144
    %147 = vbcast.lane.b32.xlu0 %v145, 256
    %v148 = vpop.permute.xlu0 %147
    %s150 = sor.u32 256, 8
    %151 = vbcast.lane.b32.xlu0 %v145, %s150
    %v152 = vpop.permute.xlu0 %151
    %v153 = vlaneseq
    %v154 = vshrl.u32 %v153, 7
    %v155 = vsub.s32 3, %v154
    %v156 = vrot.slane %v28, %v155
    %158 = vbcast.lane.b32.xlu0 %v156, 256
    %v159 = vpop.permute.xlu0 %158
    %s161 = sor.u32 256, 8
    %162 = vbcast.lane.b32.xlu0 %v156, %s161
    %v163 = vpop.permute.xlu0 %162
    %v164 = vlaneseq
    %v165 = vshrl.u32 %v164, 7
    %v166 = vsub.s32 4, %v165
    %v167 = vrot.slane %v28, %v166
    %169 = vbcast.lane.b32.xlu0 %v167, 256
    %v170 = vpop.permute.xlu0 %169
    %s172 = sor.u32 256, 8
    %173 = vbcast.lane.b32.xlu0 %v167, %s172
    %v174 = vpop.permute.xlu0 %173
    %v175 = vlaneseq
    %v176 = vshrl.u32 %v175, 7
    %v177 = vsub.s32 5, %v176
    %v178 = vrot.slane %v28, %v177
    %180 = vbcast.lane.b32.xlu0 %v178, 256
    %v181 = vpop.permute.xlu0 %180
    %s183 = sor.u32 256, 8
    %184 = vbcast.lane.b32.xlu0 %v178, %s183
    %v185 = vpop.permute.xlu0 %184
    %v186 = vlaneseq
    %v187 = vshrl.u32 %v186, 7
    %v188 = vsub.s32 6, %v187
    %v189 = vrot.slane %v28, %v188
    %191 = vbcast.lane.b32.xlu0 %v189, 256
    %v192 = vpop.permute.xlu0 %191
    %s194 = sor.u32 256, 8
    %195 = vbcast.lane.b32.xlu0 %v189, %s194
    %v196 = vpop.permute.xlu0 %195
    %v197 = vlaneseq
    %v198 = vshrl.u32 %v197, 7
    %v199 = vsub.s32 7, %v198
    %v200 = vrot.slane %v28, %v199
    %202 = vbcast.lane.b32.xlu0 %v200, 256
    %v203 = vpop.permute.xlu0 %202
    %s205 = sor.u32 256, 8
    %206 = vbcast.lane.b32.xlu0 %v200, %s205
    %v207 = vpop.permute.xlu0 %206
    %v208 = vlaneseq
    %v209 = vshrl.u32 %v208, 7
    %v210 = vsub.s32 0, %v209
    %v211 = vrot.slane %v29, %v210
    %213 = vbcast.lane.b32.xlu0 %v211, 256
    %v214 = vpop.permute.xlu0 %213
    %s216 = sor.u32 256, 8
    %217 = vbcast.lane.b32.xlu0 %v211, %s216
    %v218 = vpop.permute.xlu0 %217
    %v219 = vlaneseq
    %v220 = vshrl.u32 %v219, 7
    %v221 = vsub.s32 1, %v220
    %v222 = vrot.slane %v29, %v221
    %224 = vbcast.lane.b32.xlu0 %v222, 256
    %v225 = vpop.permute.xlu0 %224
    %s227 = sor.u32 256, 8
    %228 = vbcast.lane.b32.xlu0 %v222, %s227
    %v229 = vpop.permute.xlu0 %228
    %v230 = vlaneseq
    %v231 = vshrl.u32 %v230, 7
    %v232 = vsub.s32 2, %v231
    %v233 = vrot.slane %v29, %v232
    %235 = vbcast.lane.b32.xlu0 %v233, 256
    %v236 = vpop.permute.xlu0 %235
    %s238 = sor.u32 256, 8
    %239 = vbcast.lane.b32.xlu0 %v233, %s238
    %v240 = vpop.permute.xlu0 %239
    %v241 = vlaneseq
    %v242 = vshrl.u32 %v241, 7
    %v243 = vsub.s32 3, %v242
    %v244 = vrot.slane %v29, %v243
    %246 = vbcast.lane.b32.xlu0 %v244, 256
    %v247 = vpop.permute.xlu0 %246
    %s249 = sor.u32 256, 8
    %250 = vbcast.lane.b32.xlu0 %v244, %s249
    %v251 = vpop.permute.xlu0 %250
    %v252 = vlaneseq
    %v253 = vshrl.u32 %v252, 7
    %v254 = vsub.s32 4, %v253
    %v255 = vrot.slane %v29, %v254
    %257 = vbcast.lane.b32.xlu0 %v255, 256
    %v258 = vpop.permute.xlu0 %257
    %s260 = sor.u32 256, 8
    %261 = vbcast.lane.b32.xlu0 %v255, %s260
    %v262 = vpop.permute.xlu0 %261
    %vm263 = vcmp.eq.s32.totalorder %v38, %v31
    %vm264 = vcmp.eq.s32.totalorder %v42, %v31
    %vm265 = vcmp.eq.s32.totalorder %v49, %v31
    %vm266 = vcmp.eq.s32.totalorder %v53, %v31
    %vm267 = vcmp.eq.s32.totalorder %v60, %v31
    %vm268 = vcmp.eq.s32.totalorder %v64, %v31
    %vm269 = vcmp.eq.s32.totalorder %v71, %v31
    %vm270 = vcmp.eq.s32.totalorder %v75, %v31
    %vm271 = vcmp.eq.s32.totalorder %v82, %v31
    %vm272 = vcmp.eq.s32.totalorder %v86, %v31
    %vm273 = vcmp.eq.s32.totalorder %v93, %v31
    %vm274 = vcmp.eq.s32.totalorder %v97, %v31
    %vm275 = vcmp.eq.s32.totalorder %v104, %v31
    %vm276 = vcmp.eq.s32.totalorder %v108, %v31
    %vm277 = vcmp.eq.s32.totalorder %v115, %v31
    %vm278 = vcmp.eq.s32.totalorder %v119, %v31
    %vm279 = vcmp.eq.s32.totalorder %v126, %v31
    %vm280 = vcmp.eq.s32.totalorder %v130, %v31
    %vm281 = vcmp.eq.s32.totalorder %v137, %v31
    %vm282 = vcmp.eq.s32.totalorder %v141, %v31
    %vm283 = vcmp.eq.s32.totalorder %v148, %v31
    %vm284 = vcmp.eq.s32.totalorder %v152, %v31
    %vm285 = vcmp.eq.s32.totalorder %v159, %v31
    %vm286 = vcmp.eq.s32.totalorder %v163, %v31
    %vm287 = vcmp.eq.s32.totalorder %v170, %v31
    %vm288 = vcmp.eq.s32.totalorder %v174, %v31
    %vm289 = vcmp.eq.s32.totalorder %v181, %v31
    %vm290 = vcmp.eq.s32.totalorder %v185, %v31
    %vm291 = vcmp.eq.s32.totalorder %v192, %v31
    %vm292 = vcmp.eq.s32.totalorder %v196, %v31
    %vm293 = vcmp.eq.s32.totalorder %v203, %v31
    %vm294 = vcmp.eq.s32.totalorder %v207, %v31
    %vm295 = vcmp.eq.s32.totalorder %v214, %v31
    %vm296 = vcmp.eq.s32.totalorder %v218, %v31
    %vm297 = vcmp.eq.s32.totalorder %v225, %v31
    %vm298 = vcmp.eq.s32.totalorder %v229, %v31
    %vm299 = vcmp.eq.s32.totalorder %v236, %v31
    %vm300 = vcmp.eq.s32.totalorder %v240, %v31
    %vm301 = vcmp.eq.s32.totalorder %v247, %v31
    %vm302 = vcmp.eq.s32.totalorder %v251, %v31
    %vm303 = vcmp.eq.s32.totalorder %v258, %v31
    %vm304 = vcmp.eq.s32.totalorder %v262, %v31
    %v305 = vsel %vm263, 1, 0
    %v306 = vsel %vm264, 1, 0
    %v307 = vsel %vm265, 1, 0
    %v308 = vsel %vm266, 1, 0
    %v309 = vsel %vm267, 1, 0
    %v310 = vsel %vm268, 1, 0
    %v311 = vsel %vm269, 1, 0
    %v312 = vsel %vm270, 1, 0
    %v313 = vsel %vm271, 1, 0
    %v314 = vsel %vm272, 1, 0
    %v315 = vsel %vm273, 1, 0
    %v316 = vsel %vm274, 1, 0
    %v317 = vsel %vm275, 1, 0
    %v318 = vsel %vm276, 1, 0
    %v319 = vsel %vm277, 1, 0
    %v320 = vsel %vm278, 1, 0
    %v321 = vsel %vm279, 1, 0
    %v322 = vsel %vm280, 1, 0
    %v323 = vsel %vm281, 1, 0
    %v324 = vsel %vm282, 1, 0
    %v325 = vsel %vm283, 1, 0
    %v326 = vsel %vm284, 1, 0
    %v327 = vsel %vm285, 1, 0
    %v328 = vsel %vm286, 1, 0
    %v329 = vsel %vm287, 1, 0
    %v330 = vsel %vm288, 1, 0
    %v331 = vsel %vm289, 1, 0
    %v332 = vsel %vm290, 1, 0
    %v333 = vsel %vm291, 1, 0
    %v334 = vsel %vm292, 1, 0
    %v335 = vsel %vm293, 1, 0
    %v336 = vsel %vm294, 1, 0
    %v337 = vsel %vm295, 1, 0
    %v338 = vsel %vm296, 1, 0
    %v339 = vsel %vm297, 1, 0
    %v340 = vsel %vm298, 1, 0
    %v341 = vsel %vm299, 1, 0
    %v342 = vsel %vm300, 1, 0
    %v343 = vsel %vm301, 1, 0
    %v344 = vsel %vm302, 1, 0
    %v345 = vsel %vm303, 1, 0
    %v346 = vsel %vm304, 1, 0
    %v347 = vcvt.s32.f32 %v305
    %v348 = vcvt.s32.f32 %v306
    %v349 = vcvt.s32.f32 %v307
    %v350 = vcvt.s32.f32 %v308
    %v351 = vcvt.s32.f32 %v309
    %v352 = vcvt.s32.f32 %v310
    %v353 = vcvt.s32.f32 %v311
    %v354 = vcvt.s32.f32 %v312
    %v355 = vcvt.s32.f32 %v313
    %v356 = vcvt.s32.f32 %v314
    %v357 = vcvt.s32.f32 %v315
    %v358 = vcvt.s32.f32 %v316
    %v359 = vcvt.s32.f32 %v317
    %v360 = vcvt.s32.f32 %v318
    %v361 = vcvt.s32.f32 %v319
    %v362 = vcvt.s32.f32 %v320
    %v363 = vcvt.s32.f32 %v321
    %v364 = vcvt.s32.f32 %v322
    %v365 = vcvt.s32.f32 %v323
    %v366 = vcvt.s32.f32 %v324
    %v367 = vcvt.s32.f32 %v325
    %v368 = vcvt.s32.f32 %v326
    %v369 = vcvt.s32.f32 %v327
    %v370 = vcvt.s32.f32 %v328
    %v371 = vcvt.s32.f32 %v329
    %v372 = vcvt.s32.f32 %v330
    %v373 = vcvt.s32.f32 %v331
    %v374 = vcvt.s32.f32 %v332
    %v375 = vcvt.s32.f32 %v333
    %v376 = vcvt.s32.f32 %v334
    %v377 = vcvt.s32.f32 %v335
    %v378 = vcvt.s32.f32 %v336
    %v379 = vcvt.s32.f32 %v337
    %v380 = vcvt.s32.f32 %v338
    %v381 = vcvt.s32.f32 %v339
    %v382 = vcvt.s32.f32 %v340
    %v383 = vcvt.s32.f32 %v341
    %v384 = vcvt.s32.f32 %v342
    %v385 = vcvt.s32.f32 %v343
    %v386 = vcvt.s32.f32 %v344
    %v387 = vcvt.s32.f32 %v345
    %v388 = vcvt.s32.f32 %v346
    %v389 = vld [vmem:[%s1] sm:$0xff]
    %v390 = vld [vmem:[%s1 + $0x8] sm:$0xff]
    %v391 = vld [vmem:[%s1 + $0x10] sm:$0xff]
    %v392 = vld [vmem:[%s1 + $0x18] sm:$0x3f]
    %s393 = scalar_lea.vmem %s1, 32
    %v394 = vld [vmem:[%s393] sm:$0xff]
    %v395 = vld [vmem:[%s393 + $0x8] sm:$0xff]
    %v396 = vld [vmem:[%s393 + $0x10] sm:$0xff]
    %v397 = vld [vmem:[%s393 + $0x18] sm:$0x3f]
    %vm398 = vcmask 244736
    %v400 = vsel %vm398, %v349, 0
    %v403 = vsel %vm398, %v350, 0
    %v406 = vsel %vm398, %v351, 0
    %v409 = vsel %vm398, %v352, 0
    %v412 = vsel %vm398, %v353, 0
    %v415 = vsel %vm398, %v354, 0
    %v418 = vsel %vm398, %v355, 0
    %v421 = vsel %vm398, %v356, 0
    %v424 = vsel %vm398, %v357, 0
    %v427 = vsel %vm398, %v358, 0
    %v430 = vsel %vm398, %v359, 0
    %v433 = vsel %vm398, %v360, 0
    %v436 = vsel %vm398, %v361, 0
    %v439 = vsel %vm398, %v362, 0
    %v442 = vsel %vm398, %v363, 0
    %v445 = vsel %vm398, %v364, 0
    %v448 = vsel %vm398, %v365, 0
    %v451 = vsel %vm398, %v366, 0
    %v454 = vsel %vm398, %v367, 0
    %v457 = vsel %vm398, %v368, 0
    %v460 = vsel %vm398, %v369, 0
    %v463 = vsel %vm398, %v370, 0
    %v466 = vsel %vm398, %v371, 0
    %v469 = vsel %vm398, %v372, 0
    %v472 = vsel %vm398, %v373, 0
    %v475 = vsel %vm398, %v374, 0
    %v478 = vsel %vm398, %v375, 0
    %v481 = vsel %vm398, %v376, 0
    %v484 = vsel %vm398, %v377, 0
    %v487 = vsel %vm398, %v378, 0
    %v490 = vsel %vm398, %v379, 0
    %v493 = vsel %vm398, %v380, 0
    %v496 = vsel %vm398, %v381, 0
    %v499 = vsel %vm398, %v382, 0
    %vm501 = vcmask 1045504
    %v503 = vsel %vm501, %v397, 0
    %505 = vmatprep.subr.mxu0 0.0
    %506 = vmatpush1.msra.mxu0 0.0
    %507 = vmatprep.subr.mxu0 0.0
    %508 = vmatpush1.msra.mxu0 0.0
    %509 = vmatprep.subr.mxu0 0.0
    %510 = vmatpush1.msra.mxu0 0.0
    %511 = vmatprep.subr.mxu0 0.0
    %512 = vmatpush1.msra.mxu0 0.0
    %513 = vmatprep.subr.mxu0 0.0
    %514 = vmatpush1.msra.mxu0 0.0
    %515 = vmatprep.subr.mxu0 0.0
    %516 = vmatpush1.msra.mxu0 0.0
    %517 = vmatprep.subr.mxu0 0.0
    %518 = vmatpush1.msra.mxu0 0.0
    %519 = vmatprep.subr.mxu0 0.0
    %520 = vmatpush1.msra.mxu0 0.0
    %521 = vmatprep.subr.mxu0 0.0
    %522 = vmatpush1.msra.mxu0 0.0
    %523 = vmatprep.subr.mxu0 0.0
    %524 = vmatpush1.msra.mxu0 0.0
    %525 = vmatprep.subr.mxu0 0.0
    %526 = vmatpush1.msra.mxu0 0.0
    %527 = vmatprep.subr.mxu0 0.0
    %528 = vmatpush1.msra.mxu0 0.0
    %529 = vmatprep.subr.mxu0 0.0
    %530 = vmatpush1.msra.mxu0 %v503
    %531 = vmatprep.subr.mxu0 0.0
    %532 = vmatpush1.msra.mxu0 %v396
    %533 = vmatprep.subr.mxu0 0.0
    %534 = vmatpush1.msra.mxu0 %v395
    %535 = vmatprep.subr.mxu0 0.0
    %536 = vmatpush1.msra.mxu0 %v394
    %537 = vmatprep.subr.mxu0 0.0
    %538 = vmatpush2.msra.mxu0 0.0
    %539 = vmatprep.subr.mxu0 0.0
    %540 = vmatpush2.msra.mxu0 0.0
    %541 = vmatprep.subr.mxu0 0.0
    %542 = vmatpush2.msra.mxu0 0.0
    %543 = vmatprep.subr.mxu0 0.0
    %544 = vmatpush2.msra.mxu0 0.0
    %545 = vmatprep.subr.mxu0 0.0
    %546 = vmatpush2.msra.mxu0 0.0
    %547 = vmatprep.subr.mxu0 0.0
    %548 = vmatpush2.msra.mxu0 0.0
    %549 = vmatprep.subr.mxu0 0.0
    %550 = vmatpush2.msra.mxu0 0.0
    %551 = vmatprep.subr.mxu0 0.0
    %552 = vmatpush2.msra.mxu0 0.0
    %553 = vmatprep.subr.mxu0 0.0
    %554 = vmatpush2.msra.mxu0 0.0
    %555 = vmatprep.subr.mxu0 0.0
    %556 = vmatpush2.msra.mxu0 0.0
    %557 = vmatprep.subr.mxu0 0.0
    %558 = vmatpush2.msra.mxu0 0.0
    %559 = vmatprep.subr.mxu0 0.0
    %560 = vmatpush2.msra.mxu0 0.0
    %561 = vmatprep.subr.mxu0 0.0
    %562 = vmatpush2.msra.mxu0 0.0
    %563 = vmatprep.subr.mxu0 0.0
    %564 = vmatpush2.msra.mxu0 0.0
    %565 = vmatprep.subr.mxu0 0.0
    %566 = vmatpush2.msra.mxu0 0.0
    %567 = vmatprep.subr.mxu0 0.0
    %568 = vmatpush2.msra.mxu0 0.0
    %569 = vmatprep.mubr.f32.mxu0 0.0
    %570 = vmatmul.mubr.f32.gmra.mxu0 %v400
    %v571 = vpop.f32.mrf.mxu0
    %v572 = vadd.f32 0.0, %v571
    %v573 = vpop.f32.mrf.mxu0
    %574 = vmatprep.mubr.f32.mxu0 0.0
    %575 = vmatmul.mubr.f32.gmra.mxu0 %v403
    %v576 = vpop.f32.mrf.mxu0
    %v577 = vadd.f32 0.0, %v576
    %v578 = vpop.f32.mrf.mxu0
    %579 = vmatprep.mubr.f32.mxu0 0.0
    %580 = vmatmul.mubr.f32.gmra.mxu0 %v406
    %v581 = vpop.f32.mrf.mxu0
    %v582 = vadd.f32 0.0, %v581
    %v583 = vpop.f32.mrf.mxu0
    %584 = vmatprep.mubr.f32.mxu0 0.0
    %585 = vmatmul.mubr.f32.gmra.mxu0 %v409
    %v586 = vpop.f32.mrf.mxu0
    %v587 = vadd.f32 0.0, %v586
    %v588 = vpop.f32.mrf.mxu0
    %589 = vmatprep.mubr.f32.mxu0 0.0
    %590 = vmatmul.mubr.f32.gmra.mxu0 %v412
    %v591 = vpop.f32.mrf.mxu0
    %v592 = vadd.f32 0.0, %v591
    %v593 = vpop.f32.mrf.mxu0
    %594 = vmatprep.mubr.f32.mxu0 0.0
    %595 = vmatmul.mubr.f32.gmra.mxu0 %v415
    %v596 = vpop.f32.mrf.mxu0
    %v597 = vadd.f32 0.0, %v596
    %v598 = vpop.f32.mrf.mxu0
    %599 = vmatprep.mubr.f32.mxu0 0.0
    %600 = vmatmul.mubr.f32.gmra.mxu0 %v418
    %v601 = vpop.f32.mrf.mxu0
    %v602 = vadd.f32 0.0, %v601
    %v603 = vpop.f32.mrf.mxu0
    %604 = vmatprep.mubr.f32.mxu0 0.0
    %605 = vmatmul.mubr.f32.gmra.mxu0 %v421
    %v606 = vpop.f32.mrf.mxu0
    %v607 = vadd.f32 0.0, %v606
    %v608 = vpop.f32.mrf.mxu0
    %609 = vmatprep.mubr.f32.mxu0 0.0
    %610 = vmatmul.mubr.f32.gmra.mxu0 %v424
    %v611 = vpop.f32.mrf.mxu0
    %v612 = vadd.f32 0.0, %v611
    %v613 = vpop.f32.mrf.mxu0
    %614 = vmatprep.mubr.f32.mxu0 0.0
    %615 = vmatmul.mubr.f32.gmra.mxu0 %v427
    %v616 = vpop.f32.mrf.mxu0
    %v617 = vadd.f32 0.0, %v616
    %v618 = vpop.f32.mrf.mxu0
    %619 = vmatprep.mubr.f32.mxu0 0.0
    %620 = vmatmul.mubr.f32.gmra.mxu0 %v430
    %v621 = vpop.f32.mrf.mxu0
    %v622 = vadd.f32 0.0, %v621
    %v623 = vpop.f32.mrf.mxu0
    %624 = vmatprep.mubr.f32.mxu0 0.0
    %625 = vmatmul.mubr.f32.gmra.mxu0 %v433
    %v626 = vpop.f32.mrf.mxu0
    %v627 = vadd.f32 0.0, %v626
    %v628 = vpop.f32.mrf.mxu0
    %629 = vmatprep.mubr.f32.mxu0 0.0
    %630 = vmatmul.mubr.f32.gmra.mxu0 %v436
    %v631 = vpop.f32.mrf.mxu0
    %v632 = vadd.f32 0.0, %v631
    %v633 = vpop.f32.mrf.mxu0
    %634 = vmatprep.mubr.f32.mxu0 0.0
    %635 = vmatmul.mubr.f32.gmra.mxu0 %v439
    %v636 = vpop.f32.mrf.mxu0
    %v637 = vadd.f32 0.0, %v636
    %v638 = vpop.f32.mrf.mxu0
    %639 = vmatprep.mubr.f32.mxu0 0.0
    %640 = vmatmul.mubr.f32.gmra.mxu0 %v442
    %v641 = vpop.f32.mrf.mxu0
    %v642 = vadd.f32 0.0, %v641
    %v643 = vpop.f32.mrf.mxu0
    %644 = vmatprep.mubr.f32.mxu0 0.0
    %645 = vmatmul.mubr.f32.gmra.mxu0 %v445
    %v646 = vpop.f32.mrf.mxu0
    %v647 = vadd.f32 0.0, %v646
    %v648 = vpop.f32.mrf.mxu0
    %649 = vmatprep.mubr.f32.mxu0 0.0
    %650 = vmatmul.mubr.f32.gmra.mxu0 %v448
    %v651 = vpop.f32.mrf.mxu0
    %v652 = vadd.f32 0.0, %v651
    %v653 = vpop.f32.mrf.mxu0
    %654 = vmatprep.mubr.f32.mxu0 0.0
    %655 = vmatmul.mubr.f32.gmra.mxu0 %v451
    %v656 = vpop.f32.mrf.mxu0
    %v657 = vadd.f32 0.0, %v656
    %v658 = vpop.f32.mrf.mxu0
    %659 = vmatprep.mubr.f32.mxu0 0.0
    %660 = vmatmul.mubr.f32.gmra.mxu0 %v454
    %v661 = vpop.f32.mrf.mxu0
    %v662 = vadd.f32 0.0, %v661
    %v663 = vpop.f32.mrf.mxu0
    %664 = vmatprep.mubr.f32.mxu0 0.0
    %665 = vmatmul.mubr.f32.gmra.mxu0 %v457
    %v666 = vpop.f32.mrf.mxu0
    %v667 = vadd.f32 0.0, %v666
    %v668 = vpop.f32.mrf.mxu0
    %669 = vmatprep.mubr.f32.mxu0 0.0
    %670 = vmatmul.mubr.f32.gmra.mxu0 %v460
    %v671 = vpop.f32.mrf.mxu0
    %v672 = vadd.f32 0.0, %v671
    %v673 = vpop.f32.mrf.mxu0
    %674 = vmatprep.mubr.f32.mxu0 0.0
    %675 = vmatmul.mubr.f32.gmra.mxu0 %v463
    %v676 = vpop.f32.mrf.mxu0
    %v677 = vadd.f32 0.0, %v676
    %v678 = vpop.f32.mrf.mxu0
    %679 = vmatprep.mubr.f32.mxu0 0.0
    %680 = vmatmul.mubr.f32.gmra.mxu0 %v466
    %v681 = vpop.f32.mrf.mxu0
    %v682 = vadd.f32 0.0, %v681
    %v683 = vpop.f32.mrf.mxu0
    %684 = vmatprep.mubr.f32.mxu0 0.0
    %685 = vmatmul.mubr.f32.gmra.mxu0 %v469
    %v686 = vpop.f32.mrf.mxu0
    %v687 = vadd.f32 0.0, %v686
    %v688 = vpop.f32.mrf.mxu0
    %689 = vmatprep.mubr.f32.mxu0 0.0
    %690 = vmatmul.mubr.f32.gmra.mxu0 %v472
    %v691 = vpop.f32.mrf.mxu0
    %v692 = vadd.f32 0.0, %v691
    %v693 = vpop.f32.mrf.mxu0
    %694 = vmatprep.mubr.f32.mxu0 0.0
    %695 = vmatmul.mubr.f32.gmra.mxu0 %v475
    %v696 = vpop.f32.mrf.mxu0
    %v697 = vadd.f32 0.0, %v696
    %v698 = vpop.f32.mrf.mxu0
    %699 = vmatprep.mubr.f32.mxu0 0.0
    %700 = vmatmul.mubr.f32.gmra.mxu0 %v478
    %v701 = vpop.f32.mrf.mxu0
    %v702 = vadd.f32 0.0, %v701
    %v703 = vpop.f32.mrf.mxu0
    %704 = vmatprep.mubr.f32.mxu0 0.0
    %705 = vmatmul.mubr.f32.gmra.mxu0 %v481
    %v706 = vpop.f32.mrf.mxu0
    %v707 = vadd.f32 0.0, %v706
    %v708 = vpop.f32.mrf.mxu0
    %709 = vmatprep.mubr.f32.mxu0 0.0
    %710 = vmatmul.mubr.f32.gmra.mxu0 %v484
    %v711 = vpop.f32.mrf.mxu0
    %v712 = vadd.f32 0.0, %v711
    %v713 = vpop.f32.mrf.mxu0
    %714 = vmatprep.mubr.f32.mxu0 0.0
    %715 = vmatmul.mubr.f32.gmra.mxu0 %v487
    %v716 = vpop.f32.mrf.mxu0
    %v717 = vadd.f32 0.0, %v716
    %v718 = vpop.f32.mrf.mxu0
    %719 = vmatprep.mubr.f32.mxu0 0.0
    %720 = vmatmul.mubr.f32.gmra.mxu0 %v490
    %v721 = vpop.f32.mrf.mxu0
    %v722 = vadd.f32 0.0, %v721
    %v723 = vpop.f32.mrf.mxu0
    %724 = vmatprep.mubr.f32.mxu0 0.0
    %725 = vmatmul.mubr.f32.gmra.mxu0 %v493
    %v726 = vpop.f32.mrf.mxu0
    %v727 = vadd.f32 0.0, %v726
    %v728 = vpop.f32.mrf.mxu0
    %729 = vmatprep.mubr.f32.mxu0 0.0
    %730 = vmatmul.mubr.f32.gmra.mxu0 %v496
    %v731 = vpop.f32.mrf.mxu0
    %v732 = vadd.f32 0.0, %v731
    %v733 = vpop.f32.mrf.mxu0
    %734 = vmatprep.mubr.f32.mxu0 0.0
    %735 = vmatmul.mubr.f32.gmra.mxu0 %v499
    %v736 = vpop.f32.mrf.mxu0
    %v737 = vadd.f32 0.0, %v736
    %v738 = vpop.f32.mrf.mxu0
    %739 = vdwg.mxu0
    %v741 = vsel %vm398, %v347, 0
    %v744 = vsel %vm398, %v348, 0
    %v747 = vsel %vm501, %v392, 0
    %749 = vmatprep.subr.mxu0 0.0
    %750 = vmatpush1.msra.mxu0 0.0
    %751 = vmatprep.subr.mxu0 0.0
    %752 = vmatpush1.msra.mxu0 0.0
    %753 = vmatprep.subr.mxu0 0.0
    %754 = vmatpush1.msra.mxu0 0.0
    %755 = vmatprep.subr.mxu0 0.0
    %756 = vmatpush1.msra.mxu0 0.0
    %757 = vmatprep.subr.mxu0 0.0
    %758 = vmatpush1.msra.mxu0 0.0
    %759 = vmatprep.subr.mxu0 0.0
    %760 = vmatpush1.msra.mxu0 0.0
    %761 = vmatprep.subr.mxu0 0.0
    %762 = vmatpush1.msra.mxu0 0.0
    %763 = vmatprep.subr.mxu0 0.0
    %764 = vmatpush1.msra.mxu0 0.0
    %765 = vmatprep.subr.mxu0 0.0
    %766 = vmatpush1.msra.mxu0 0.0
    %767 = vmatprep.subr.mxu0 0.0
    %768 = vmatpush1.msra.mxu0 0.0
    %769 = vmatprep.subr.mxu0 0.0
    %770 = vmatpush1.msra.mxu0 0.0
    %771 = vmatprep.subr.mxu0 0.0
    %772 = vmatpush1.msra.mxu0 0.0
    %773 = vmatprep.subr.mxu0 0.0
    %774 = vmatpush1.msra.mxu0 %v747
    %775 = vmatprep.subr.mxu0 0.0
    %776 = vmatpush1.msra.mxu0 %v391
    %777 = vmatprep.subr.mxu0 0.0
    %778 = vmatpush1.msra.mxu0 %v390
    %779 = vmatprep.subr.mxu0 0.0
    %780 = vmatpush1.msra.mxu0 %v389
    %781 = vmatprep.subr.mxu0 0.0
    %782 = vmatpush2.msra.mxu0 0.0
    %783 = vmatprep.subr.mxu0 0.0
    %784 = vmatpush2.msra.mxu0 0.0
    %785 = vmatprep.subr.mxu0 0.0
    %786 = vmatpush2.msra.mxu0 0.0
    %787 = vmatprep.subr.mxu0 0.0
    %788 = vmatpush2.msra.mxu0 0.0
    %789 = vmatprep.subr.mxu0 0.0
    %790 = vmatpush2.msra.mxu0 0.0
    %791 = vmatprep.subr.mxu0 0.0
    %792 = vmatpush2.msra.mxu0 0.0
    %793 = vmatprep.subr.mxu0 0.0
    %794 = vmatpush2.msra.mxu0 0.0
    %795 = vmatprep.subr.mxu0 0.0
    %796 = vmatpush2.msra.mxu0 0.0
    %797 = vmatprep.subr.mxu0 0.0
    %798 = vmatpush2.msra.mxu0 0.0
    %799 = vmatprep.subr.mxu0 0.0
    %800 = vmatpush2.msra.mxu0 0.0
    %801 = vmatprep.subr.mxu0 0.0
    %802 = vmatpush2.msra.mxu0 0.0
    %803 = vmatprep.subr.mxu0 0.0
    %804 = vmatpush2.msra.mxu0 0.0
    %805 = vmatprep.subr.mxu0 0.0
    %806 = vmatpush2.msra.mxu0 0.0
    %807 = vmatprep.subr.mxu0 0.0
    %808 = vmatpush2.msra.mxu0 0.0
    %809 = vmatprep.subr.mxu0 0.0
    %810 = vmatpush2.msra.mxu0 0.0
    %811 = vmatprep.subr.mxu0 0.0
    %812 = vmatpush2.msra.mxu0 0.0
    %813 = vmatprep.mubr.f32.mxu0 0.0
    %814 = vmatmul.mubr.f32.gmra.mxu0 %v741
    %v815 = vpop.f32.mrf.mxu0
    %v816 = vadd.f32 %v572, %v815
    %v817 = vpop.f32.mrf.mxu0
    %818 = vmatprep.mubr.f32.mxu0 0.0
    %819 = vmatmul.mubr.f32.gmra.mxu0 %v744
    %v820 = vpop.f32.mrf.mxu0
    %v821 = vadd.f32 %v577, %v820
    %v822 = vpop.f32.mrf.mxu0
    %823 = vmatprep.mubr.f32.mxu0 0.0
    %824 = vmatmul.mubr.f32.gmra.mxu0 %v400
    %v825 = vpop.f32.mrf.mxu0
    %v826 = vadd.f32 %v582, %v825
    %v827 = vpop.f32.mrf.mxu0
    %828 = vmatprep.mubr.f32.mxu0 0.0
    %829 = vmatmul.mubr.f32.gmra.mxu0 %v403
    %v830 = vpop.f32.mrf.mxu0
    %v831 = vadd.f32 %v587, %v830
    %v832 = vpop.f32.mrf.mxu0
    %833 = vmatprep.mubr.f32.mxu0 0.0
    %834 = vmatmul.mubr.f32.gmra.mxu0 %v406
    %v835 = vpop.f32.mrf.mxu0
    %v836 = vadd.f32 %v592, %v835
    %v837 = vpop.f32.mrf.mxu0
    %838 = vmatprep.mubr.f32.mxu0 0.0
    %839 = vmatmul.mubr.f32.gmra.mxu0 %v409
    %v840 = vpop.f32.mrf.mxu0
    %v841 = vadd.f32 %v597, %v840
    %v842 = vpop.f32.mrf.mxu0
    %843 = vmatprep.mubr.f32.mxu0 0.0
    %844 = vmatmul.mubr.f32.gmra.mxu0 %v412
    %v845 = vpop.f32.mrf.mxu0
    %v846 = vadd.f32 %v602, %v845
    %v847 = vpop.f32.mrf.mxu0
    %848 = vmatprep.mubr.f32.mxu0 0.0
    %849 = vmatmul.mubr.f32.gmra.mxu0 %v415
    %v850 = vpop.f32.mrf.mxu0
    %v851 = vadd.f32 %v607, %v850
    %v852 = vpop.f32.mrf.mxu0
    %853 = vmatprep.mubr.f32.mxu0 0.0
    %854 = vmatmul.mubr.f32.gmra.mxu0 %v418
    %v855 = vpop.f32.mrf.mxu0
    %v856 = vadd.f32 %v612, %v855
    %v857 = vpop.f32.mrf.mxu0
    %858 = vmatprep.mubr.f32.mxu0 0.0
    %859 = vmatmul.mubr.f32.gmra.mxu0 %v421
    %v860 = vpop.f32.mrf.mxu0
    %v861 = vadd.f32 %v617, %v860
    %v862 = vpop.f32.mrf.mxu0
    %863 = vmatprep.mubr.f32.mxu0 0.0
    %864 = vmatmul.mubr.f32.gmra.mxu0 %v424
    %v865 = vpop.f32.mrf.mxu0
    %v866 = vadd.f32 %v622, %v865
    %v867 = vpop.f32.mrf.mxu0
    %868 = vmatprep.mubr.f32.mxu0 0.0
    %869 = vmatmul.mubr.f32.gmra.mxu0 %v427
    %v870 = vpop.f32.mrf.mxu0
    %v871 = vadd.f32 %v627, %v870
    %v872 = vpop.f32.mrf.mxu0
    %873 = vmatprep.mubr.f32.mxu0 0.0
    %874 = vmatmul.mubr.f32.gmra.mxu0 %v430
    %v875 = vpop.f32.mrf.mxu0
    %v876 = vadd.f32 %v632, %v875
    %v877 = vpop.f32.mrf.mxu0
    %878 = vmatprep.mubr.f32.mxu0 0.0
    %879 = vmatmul.mubr.f32.gmra.mxu0 %v433
    %v880 = vpop.f32.mrf.mxu0
    %v881 = vadd.f32 %v637, %v880
    %v882 = vpop.f32.mrf.mxu0
    %883 = vmatprep.mubr.f32.mxu0 0.0
    %884 = vmatmul.mubr.f32.gmra.mxu0 %v436
    %v885 = vpop.f32.mrf.mxu0
    %v886 = vadd.f32 %v642, %v885
    %v887 = vpop.f32.mrf.mxu0
    %888 = vmatprep.mubr.f32.mxu0 0.0
    %889 = vmatmul.mubr.f32.gmra.mxu0 %v439
    %v890 = vpop.f32.mrf.mxu0
    %v891 = vadd.f32 %v647, %v890
    %v892 = vpop.f32.mrf.mxu0
    %893 = vmatprep.mubr.f32.mxu0 0.0
    %894 = vmatmul.mubr.f32.gmra.mxu0 %v442
    %v895 = vpop.f32.mrf.mxu0
    %v896 = vadd.f32 %v652, %v895
    %v897 = vpop.f32.mrf.mxu0
    %898 = vmatprep.mubr.f32.mxu0 0.0
    %899 = vmatmul.mubr.f32.gmra.mxu0 %v445
    %v900 = vpop.f32.mrf.mxu0
    %v901 = vadd.f32 %v657, %v900
    %v902 = vpop.f32.mrf.mxu0
    %903 = vmatprep.mubr.f32.mxu0 0.0
    %904 = vmatmul.mubr.f32.gmra.mxu0 %v448
    %v905 = vpop.f32.mrf.mxu0
    %v906 = vadd.f32 %v662, %v905
    %v907 = vpop.f32.mrf.mxu0
    %908 = vmatprep.mubr.f32.mxu0 0.0
    %909 = vmatmul.mubr.f32.gmra.mxu0 %v451
    %v910 = vpop.f32.mrf.mxu0
    %v911 = vadd.f32 %v667, %v910
    %v912 = vpop.f32.mrf.mxu0
    %913 = vmatprep.mubr.f32.mxu0 0.0
    %914 = vmatmul.mubr.f32.gmra.mxu0 %v454
    %v915 = vpop.f32.mrf.mxu0
    %v916 = vadd.f32 %v672, %v915
    %v917 = vpop.f32.mrf.mxu0
    %918 = vmatprep.mubr.f32.mxu0 0.0
    %919 = vmatmul.mubr.f32.gmra.mxu0 %v457
    %v920 = vpop.f32.mrf.mxu0
    %v921 = vadd.f32 %v677, %v920
    %v922 = vpop.f32.mrf.mxu0
    %923 = vmatprep.mubr.f32.mxu0 0.0
    %924 = vmatmul.mubr.f32.gmra.mxu0 %v460
    %v925 = vpop.f32.mrf.mxu0
    %v926 = vadd.f32 %v682, %v925
    %v927 = vpop.f32.mrf.mxu0
    %928 = vmatprep.mubr.f32.mxu0 0.0
    %929 = vmatmul.mubr.f32.gmra.mxu0 %v463
    %v930 = vpop.f32.mrf.mxu0
    %v931 = vadd.f32 %v687, %v930
    %v932 = vpop.f32.mrf.mxu0
    %933 = vmatprep.mubr.f32.mxu0 0.0
    %934 = vmatmul.mubr.f32.gmra.mxu0 %v466
    %v935 = vpop.f32.mrf.mxu0
    %v936 = vadd.f32 %v692, %v935
    %v937 = vpop.f32.mrf.mxu0
    %938 = vmatprep.mubr.f32.mxu0 0.0
    %939 = vmatmul.mubr.f32.gmra.mxu0 %v469
    %v940 = vpop.f32.mrf.mxu0
    %v941 = vadd.f32 %v697, %v940
    %v942 = vpop.f32.mrf.mxu0
    %943 = vmatprep.mubr.f32.mxu0 0.0
    %944 = vmatmul.mubr.f32.gmra.mxu0 %v472
    %v945 = vpop.f32.mrf.mxu0
    %v946 = vadd.f32 %v702, %v945
    %v947 = vpop.f32.mrf.mxu0
    %948 = vmatprep.mubr.f32.mxu0 0.0
    %949 = vmatmul.mubr.f32.gmra.mxu0 %v475
    %v950 = vpop.f32.mrf.mxu0
    %v951 = vadd.f32 %v707, %v950
    %v952 = vpop.f32.mrf.mxu0
    %953 = vmatprep.mubr.f32.mxu0 0.0
    %954 = vmatmul.mubr.f32.gmra.mxu0 %v478
    %v955 = vpop.f32.mrf.mxu0
    %v956 = vadd.f32 %v712, %v955
    %v957 = vpop.f32.mrf.mxu0
    %958 = vmatprep.mubr.f32.mxu0 0.0
    %959 = vmatmul.mubr.f32.gmra.mxu0 %v481
    %v960 = vpop.f32.mrf.mxu0
    %v961 = vadd.f32 %v717, %v960
    %v962 = vpop.f32.mrf.mxu0
    %963 = vmatprep.mubr.f32.mxu0 0.0
    %964 = vmatmul.mubr.f32.gmra.mxu0 %v484
    %v965 = vpop.f32.mrf.mxu0
    %v966 = vadd.f32 %v722, %v965
    %v967 = vpop.f32.mrf.mxu0
    %968 = vmatprep.mubr.f32.mxu0 0.0
    %969 = vmatmul.mubr.f32.gmra.mxu0 %v487
    %v970 = vpop.f32.mrf.mxu0
    %v971 = vadd.f32 %v727, %v970
    %v972 = vpop.f32.mrf.mxu0
    %973 = vmatprep.mubr.f32.mxu0 0.0
    %974 = vmatmul.mubr.f32.gmra.mxu0 %v490
    %v975 = vpop.f32.mrf.mxu0
    %v976 = vadd.f32 %v732, %v975
    %v977 = vpop.f32.mrf.mxu0
    %978 = vmatprep.mubr.f32.mxu0 0.0
    %979 = vmatmul.mubr.f32.gmra.mxu0 %v493
    %v980 = vpop.f32.mrf.mxu0
    %v981 = vadd.f32 %v737, %v980
    %v982 = vpop.f32.mrf.mxu0
    %983 = vdwg.mxu0
    %s984 = scalar_lea.vmem %s1, 64
    %v985 = vld [vmem:[%s984] sm:$0xff]
    %v986 = vld [vmem:[%s984 + $0x8] sm:$0xff]
    %v987 = vld [vmem:[%s984 + $0x10] sm:$0xff]
    %v988 = vld [vmem:[%s984 + $0x18] sm:$0x3f]
    %v990 = vsel %vm398, %v383, 0
    %v993 = vsel %vm398, %v384, 0
    %v996 = vsel %vm501, %v988, 0
    %998 = vmatprep.subr.mxu0 0.0
    %999 = vmatpush1.msra.mxu0 0.0
    %1000 = vmatprep.subr.mxu0 0.0
    %1001 = vmatpush1.msra.mxu0 0.0
    %1002 = vmatprep.subr.mxu0 0.0
    %1003 = vmatpush1.msra.mxu0 0.0
    %1004 = vmatprep.subr.mxu0 0.0
    %1005 = vmatpush1.msra.mxu0 0.0
    %1006 = vmatprep.subr.mxu0 0.0
    %1007 = vmatpush1.msra.mxu0 0.0
    %1008 = vmatprep.subr.mxu0 0.0
    %1009 = vmatpush1.msra.mxu0 0.0
    %1010 = vmatprep.subr.mxu0 0.0
    %1011 = vmatpush1.msra.mxu0 0.0
    %1012 = vmatprep.subr.mxu0 0.0
    %1013 = vmatpush1.msra.mxu0 0.0
    %1014 = vmatprep.subr.mxu0 0.0
    %1015 = vmatpush1.msra.mxu0 0.0
    %1016 = vmatprep.subr.mxu0 0.0
    %1017 = vmatpush1.msra.mxu0 0.0
    %1018 = vmatprep.subr.mxu0 0.0
    %1019 = vmatpush1.msra.mxu0 0.0
    %1020 = vmatprep.subr.mxu0 0.0
    %1021 = vmatpush1.msra.mxu0 0.0
    %1022 = vmatprep.subr.mxu0 0.0
    %1023 = vmatpush1.msra.mxu0 %v996
    %1024 = vmatprep.subr.mxu0 0.0
    %1025 = vmatpush1.msra.mxu0 %v987
    %1026 = vmatprep.subr.mxu0 0.0
    %1027 = vmatpush1.msra.mxu0 %v986
    %1028 = vmatprep.subr.mxu0 0.0
    %1029 = vmatpush1.msra.mxu0 %v985
    %1030 = vmatprep.subr.mxu0 0.0
    %1031 = vmatpush2.msra.mxu0 0.0
    %1032 = vmatprep.subr.mxu0 0.0
    %1033 = vmatpush2.msra.mxu0 0.0
    %1034 = vmatprep.subr.mxu0 0.0
    %1035 = vmatpush2.msra.mxu0 0.0
    %1036 = vmatprep.subr.mxu0 0.0
    %1037 = vmatpush2.msra.mxu0 0.0
    %1038 = vmatprep.subr.mxu0 0.0
    %1039 = vmatpush2.msra.mxu0 0.0
    %1040 = vmatprep.subr.mxu0 0.0
    %1041 = vmatpush2.msra.mxu0 0.0
    %1042 = vmatprep.subr.mxu0 0.0
    %1043 = vmatpush2.msra.mxu0 0.0
    %1044 = vmatprep.subr.mxu0 0.0
    %1045 = vmatpush2.msra.mxu0 0.0
    %1046 = vmatprep.subr.mxu0 0.0
    %1047 = vmatpush2.msra.mxu0 0.0
    %1048 = vmatprep.subr.mxu0 0.0
    %1049 = vmatpush2.msra.mxu0 0.0
    %1050 = vmatprep.subr.mxu0 0.0
    %1051 = vmatpush2.msra.mxu0 0.0
    %1052 = vmatprep.subr.mxu0 0.0
    %1053 = vmatpush2.msra.mxu0 0.0
    %1054 = vmatprep.subr.mxu0 0.0
    %1055 = vmatpush2.msra.mxu0 0.0
    %1056 = vmatprep.subr.mxu0 0.0
    %1057 = vmatpush2.msra.mxu0 0.0
    %1058 = vmatprep.subr.mxu0 0.0
    %1059 = vmatpush2.msra.mxu0 0.0
    %1060 = vmatprep.subr.mxu0 0.0
    %1061 = vmatpush2.msra.mxu0 0.0
    %1062 = vmatprep.mubr.f32.mxu0 0.0
    %1063 = vmatmul.mubr.f32.gmra.mxu0 %v406
    %v1064 = vpop.f32.mrf.mxu0
    %v1065 = vadd.f32 0.0, %v1064
    %v1066 = vpop.f32.mrf.mxu0
    %1067 = vmatprep.mubr.f32.mxu0 0.0
    %1068 = vmatmul.mubr.f32.gmra.mxu0 %v409
    %v1069 = vpop.f32.mrf.mxu0
    %v1070 = vadd.f32 0.0, %v1069
    %v1071 = vpop.f32.mrf.mxu0
    %1072 = vmatprep.mubr.f32.mxu0 0.0
    %1073 = vmatmul.mubr.f32.gmra.mxu0 %v412
    %v1074 = vpop.f32.mrf.mxu0
    %v1075 = vadd.f32 0.0, %v1074
    %v1076 = vpop.f32.mrf.mxu0
    %1077 = vmatprep.mubr.f32.mxu0 0.0
    %1078 = vmatmul.mubr.f32.gmra.mxu0 %v415
    %v1079 = vpop.f32.mrf.mxu0
    %v1080 = vadd.f32 0.0, %v1079
    %v1081 = vpop.f32.mrf.mxu0
    %1082 = vmatprep.mubr.f32.mxu0 0.0
    %1083 = vmatmul.mubr.f32.gmra.mxu0 %v418
    %v1084 = vpop.f32.mrf.mxu0
    %v1085 = vadd.f32 0.0, %v1084
    %v1086 = vpop.f32.mrf.mxu0
    %1087 = vmatprep.mubr.f32.mxu0 0.0
    %1088 = vmatmul.mubr.f32.gmra.mxu0 %v421
    %v1089 = vpop.f32.mrf.mxu0
    %v1090 = vadd.f32 0.0, %v1089
    %v1091 = vpop.f32.mrf.mxu0
    %1092 = vmatprep.mubr.f32.mxu0 0.0
    %1093 = vmatmul.mubr.f32.gmra.mxu0 %v424
    %v1094 = vpop.f32.mrf.mxu0
    %v1095 = vadd.f32 0.0, %v1094
    %v1096 = vpop.f32.mrf.mxu0
    %1097 = vmatprep.mubr.f32.mxu0 0.0
    %1098 = vmatmul.mubr.f32.gmra.mxu0 %v427
    %v1099 = vpop.f32.mrf.mxu0
    %v1100 = vadd.f32 0.0, %v1099
    %v1101 = vpop.f32.mrf.mxu0
    %1102 = vmatprep.mubr.f32.mxu0 0.0
    %1103 = vmatmul.mubr.f32.gmra.mxu0 %v430
    %v1104 = vpop.f32.mrf.mxu0
    %v1105 = vadd.f32 0.0, %v1104
    %v1106 = vpop.f32.mrf.mxu0
    %1107 = vmatprep.mubr.f32.mxu0 0.0
    %1108 = vmatmul.mubr.f32.gmra.mxu0 %v433
    %v1109 = vpop.f32.mrf.mxu0
    %v1110 = vadd.f32 0.0, %v1109
    %v1111 = vpop.f32.mrf.mxu0
    %1112 = vmatprep.mubr.f32.mxu0 0.0
    %1113 = vmatmul.mubr.f32.gmra.mxu0 %v436
    %v1114 = vpop.f32.mrf.mxu0
    %v1115 = vadd.f32 0.0, %v1114
    %v1116 = vpop.f32.mrf.mxu0
    %1117 = vmatprep.mubr.f32.mxu0 0.0
    %1118 = vmatmul.mubr.f32.gmra.mxu0 %v439
    %v1119 = vpop.f32.mrf.mxu0
    %v1120 = vadd.f32 0.0, %v1119
    %v1121 = vpop.f32.mrf.mxu0
    %1122 = vmatprep.mubr.f32.mxu0 0.0
    %1123 = vmatmul.mubr.f32.gmra.mxu0 %v442
    %v1124 = vpop.f32.mrf.mxu0
    %v1125 = vadd.f32 0.0, %v1124
    %v1126 = vpop.f32.mrf.mxu0
    %1127 = vmatprep.mubr.f32.mxu0 0.0
    %1128 = vmatmul.mubr.f32.gmra.mxu0 %v445
    %v1129 = vpop.f32.mrf.mxu0
    %v1130 = vadd.f32 0.0, %v1129
    %v1131 = vpop.f32.mrf.mxu0
    %1132 = vmatprep.mubr.f32.mxu0 0.0
    %1133 = vmatmul.mubr.f32.gmra.mxu0 %v448
    %v1134 = vpop.f32.mrf.mxu0
    %v1135 = vadd.f32 0.0, %v1134
    %v1136 = vpop.f32.mrf.mxu0
    %1137 = vmatprep.mubr.f32.mxu0 0.0
    %1138 = vmatmul.mubr.f32.gmra.mxu0 %v451
    %v1139 = vpop.f32.mrf.mxu0
    %v1140 = vadd.f32 0.0, %v1139
    %v1141 = vpop.f32.mrf.mxu0
    %1142 = vmatprep.mubr.f32.mxu0 0.0
    %1143 = vmatmul.mubr.f32.gmra.mxu0 %v454
    %v1144 = vpop.f32.mrf.mxu0
    %v1145 = vadd.f32 0.0, %v1144
    %v1146 = vpop.f32.mrf.mxu0
    %1147 = vmatprep.mubr.f32.mxu0 0.0
    %1148 = vmatmul.mubr.f32.gmra.mxu0 %v457
    %v1149 = vpop.f32.mrf.mxu0
    %v1150 = vadd.f32 0.0, %v1149
    %v1151 = vpop.f32.mrf.mxu0
    %1152 = vmatprep.mubr.f32.mxu0 0.0
    %1153 = vmatmul.mubr.f32.gmra.mxu0 %v460
    %v1154 = vpop.f32.mrf.mxu0
    %v1155 = vadd.f32 0.0, %v1154
    %v1156 = vpop.f32.mrf.mxu0
    %1157 = vmatprep.mubr.f32.mxu0 0.0
    %1158 = vmatmul.mubr.f32.gmra.mxu0 %v463
    %v1159 = vpop.f32.mrf.mxu0
    %v1160 = vadd.f32 0.0, %v1159
    %v1161 = vpop.f32.mrf.mxu0
    %1162 = vmatprep.mubr.f32.mxu0 0.0
    %1163 = vmatmul.mubr.f32.gmra.mxu0 %v466
    %v1164 = vpop.f32.mrf.mxu0
    %v1165 = vadd.f32 0.0, %v1164
    %v1166 = vpop.f32.mrf.mxu0
    %1167 = vmatprep.mubr.f32.mxu0 0.0
    %1168 = vmatmul.mubr.f32.gmra.mxu0 %v469
    %v1169 = vpop.f32.mrf.mxu0
    %v1170 = vadd.f32 0.0, %v1169
    %v1171 = vpop.f32.mrf.mxu0
    %1172 = vmatprep.mubr.f32.mxu0 0.0
    %1173 = vmatmul.mubr.f32.gmra.mxu0 %v472
    %v1174 = vpop.f32.mrf.mxu0
    %v1175 = vadd.f32 0.0, %v1174
    %v1176 = vpop.f32.mrf.mxu0
    %1177 = vmatprep.mubr.f32.mxu0 0.0
    %1178 = vmatmul.mubr.f32.gmra.mxu0 %v475
    %v1179 = vpop.f32.mrf.mxu0
    %v1180 = vadd.f32 0.0, %v1179
    %v1181 = vpop.f32.mrf.mxu0
    %1182 = vmatprep.mubr.f32.mxu0 0.0
    %1183 = vmatmul.mubr.f32.gmra.mxu0 %v478
    %v1184 = vpop.f32.mrf.mxu0
    %v1185 = vadd.f32 0.0, %v1184
    %v1186 = vpop.f32.mrf.mxu0
    %1187 = vmatprep.mubr.f32.mxu0 0.0
    %1188 = vmatmul.mubr.f32.gmra.mxu0 %v481
    %v1189 = vpop.f32.mrf.mxu0
    %v1190 = vadd.f32 0.0, %v1189
    %v1191 = vpop.f32.mrf.mxu0
    %1192 = vmatprep.mubr.f32.mxu0 0.0
    %1193 = vmatmul.mubr.f32.gmra.mxu0 %v484
    %v1194 = vpop.f32.mrf.mxu0
    %v1195 = vadd.f32 0.0, %v1194
    %v1196 = vpop.f32.mrf.mxu0
    %1197 = vmatprep.mubr.f32.mxu0 0.0
    %1198 = vmatmul.mubr.f32.gmra.mxu0 %v487
    %v1199 = vpop.f32.mrf.mxu0
    %v1200 = vadd.f32 0.0, %v1199
    %v1201 = vpop.f32.mrf.mxu0
    %1202 = vmatprep.mubr.f32.mxu0 0.0
    %1203 = vmatmul.mubr.f32.gmra.mxu0 %v490
    %v1204 = vpop.f32.mrf.mxu0
    %v1205 = vadd.f32 0.0, %v1204
    %v1206 = vpop.f32.mrf.mxu0
    %1207 = vmatprep.mubr.f32.mxu0 0.0
    %1208 = vmatmul.mubr.f32.gmra.mxu0 %v493
    %v1209 = vpop.f32.mrf.mxu0
    %v1210 = vadd.f32 0.0, %v1209
    %v1211 = vpop.f32.mrf.mxu0
    %1212 = vmatprep.mubr.f32.mxu0 0.0
    %1213 = vmatmul.mubr.f32.gmra.mxu0 %v496
    %v1214 = vpop.f32.mrf.mxu0
    %v1215 = vadd.f32 0.0, %v1214
    %v1216 = vpop.f32.mrf.mxu0
    %1217 = vmatprep.mubr.f32.mxu0 0.0
    %1218 = vmatmul.mubr.f32.gmra.mxu0 %v499
    %v1219 = vpop.f32.mrf.mxu0
    %v1220 = vadd.f32 0.0, %v1219
    %v1221 = vpop.f32.mrf.mxu0
    %1222 = vmatprep.mubr.f32.mxu0 0.0
    %1223 = vmatmul.mubr.f32.gmra.mxu0 %v990
    %v1224 = vpop.f32.mrf.mxu0
    %v1225 = vadd.f32 0.0, %v1224
    %v1226 = vpop.f32.mrf.mxu0
    %1227 = vmatprep.mubr.f32.mxu0 0.0
    %1228 = vmatmul.mubr.f32.gmra.mxu0 %v993
    %v1229 = vpop.f32.mrf.mxu0
    %v1230 = vadd.f32 0.0, %v1229
    %v1231 = vpop.f32.mrf.mxu0
    %1232 = vdwg.mxu0
    %v1233 = vadd.f32 %v816, %v1065
    %v1234 = vadd.f32 %v821, %v1070
    %v1235 = vadd.f32 %v826, %v1075
    %v1236 = vadd.f32 %v831, %v1080
    %v1237 = vadd.f32 %v836, %v1085
    %v1238 = vadd.f32 %v841, %v1090
    %v1239 = vadd.f32 %v846, %v1095
    %v1240 = vadd.f32 %v851, %v1100
    %v1241 = vadd.f32 %v856, %v1105
    %v1242 = vadd.f32 %v861, %v1110
    %v1243 = vadd.f32 %v866, %v1115
    %v1244 = vadd.f32 %v871, %v1120
    %v1245 = vadd.f32 %v876, %v1125
    %v1246 = vadd.f32 %v881, %v1130
    %v1247 = vadd.f32 %v886, %v1135
    %v1248 = vadd.f32 %v891, %v1140
    %v1249 = vadd.f32 %v896, %v1145
    %v1250 = vadd.f32 %v901, %v1150
    %v1251 = vadd.f32 %v906, %v1155
    %v1252 = vadd.f32 %v911, %v1160
    %v1253 = vadd.f32 %v916, %v1165
    %v1254 = vadd.f32 %v921, %v1170
    %v1255 = vadd.f32 %v926, %v1175
    %v1256 = vadd.f32 %v931, %v1180
    %v1257 = vadd.f32 %v936, %v1185
    %v1258 = vadd.f32 %v941, %v1190
    %v1259 = vadd.f32 %v946, %v1195
    %v1260 = vadd.f32 %v951, %v1200
    %v1261 = vadd.f32 %v956, %v1205
    %v1262 = vadd.f32 %v961, %v1210
    %v1263 = vadd.f32 %v966, %v1215
    %v1264 = vadd.f32 %v971, %v1220
    %v1265 = vadd.f32 %v976, %v1225
    %v1266 = vadd.f32 %v981, %v1230
    %s1267 = scalar_lea.vmem %s1, 96
    %v1268 = vld [vmem:[%s1267] sm:$0xff]
    %v1269 = vld [vmem:[%s1267 + $0x8] sm:$0xff]
    %v1270 = vld [vmem:[%s1267 + $0x10] sm:$0xff]
    %v1271 = vld [vmem:[%s1267 + $0x18] sm:$0x3f]
    %v1273 = vsel %vm398, %v385, 0
    %v1276 = vsel %vm398, %v386, 0
    %v1279 = vsel %vm501, %v1271, 0
    %1281 = vmatprep.subr.mxu0 0.0
    %1282 = vmatpush1.msra.mxu0 0.0
    %1283 = vmatprep.subr.mxu0 0.0
    %1284 = vmatpush1.msra.mxu0 0.0
    %1285 = vmatprep.subr.mxu0 0.0
    %1286 = vmatpush1.msra.mxu0 0.0
    %1287 = vmatprep.subr.mxu0 0.0
    %1288 = vmatpush1.msra.mxu0 0.0
    %1289 = vmatprep.subr.mxu0 0.0
    %1290 = vmatpush1.msra.mxu0 0.0
    %1291 = vmatprep.subr.mxu0 0.0
    %1292 = vmatpush1.msra.mxu0 0.0
    %1293 = vmatprep.subr.mxu0 0.0
    %1294 = vmatpush1.msra.mxu0 0.0
    %1295 = vmatprep.subr.mxu0 0.0
    %1296 = vmatpush1.msra.mxu0 0.0
    %1297 = vmatprep.subr.mxu0 0.0
    %1298 = vmatpush1.msra.mxu0 0.0
    %1299 = vmatprep.subr.mxu0 0.0
    %1300 = vmatpush1.msra.mxu0 0.0
    %1301 = vmatprep.subr.mxu0 0.0
    %1302 = vmatpush1.msra.mxu0 0.0
    %1303 = vmatprep.subr.mxu0 0.0
    %1304 = vmatpush1.msra.mxu0 0.0
    %1305 = vmatprep.subr.mxu0 0.0
    %1306 = vmatpush1.msra.mxu0 %v1279
    %1307 = vmatprep.subr.mxu0 0.0
    %1308 = vmatpush1.msra.mxu0 %v1270
    %1309 = vmatprep.subr.mxu0 0.0
    %1310 = vmatpush1.msra.mxu0 %v1269
    %1311 = vmatprep.subr.mxu0 0.0
    %1312 = vmatpush1.msra.mxu0 %v1268
    %1313 = vmatprep.subr.mxu0 0.0
    %1314 = vmatpush2.msra.mxu0 0.0
    %1315 = vmatprep.subr.mxu0 0.0
    %1316 = vmatpush2.msra.mxu0 0.0
    %1317 = vmatprep.subr.mxu0 0.0
    %1318 = vmatpush2.msra.mxu0 0.0
    %1319 = vmatprep.subr.mxu0 0.0
    %1320 = vmatpush2.msra.mxu0 0.0
    %1321 = vmatprep.subr.mxu0 0.0
    %1322 = vmatpush2.msra.mxu0 0.0
    %1323 = vmatprep.subr.mxu0 0.0
    %1324 = vmatpush2.msra.mxu0 0.0
    %1325 = vmatprep.subr.mxu0 0.0
    %1326 = vmatpush2.msra.mxu0 0.0
    %1327 = vmatprep.subr.mxu0 0.0
    %1328 = vmatpush2.msra.mxu0 0.0
    %1329 = vmatprep.subr.mxu0 0.0
    %1330 = vmatpush2.msra.mxu0 0.0
    %1331 = vmatprep.subr.mxu0 0.0
    %1332 = vmatpush2.msra.mxu0 0.0
    %1333 = vmatprep.subr.mxu0 0.0
    %1334 = vmatpush2.msra.mxu0 0.0
    %1335 = vmatprep.subr.mxu0 0.0
    %1336 = vmatpush2.msra.mxu0 0.0
    %1337 = vmatprep.subr.mxu0 0.0
    %1338 = vmatpush2.msra.mxu0 0.0
    %1339 = vmatprep.subr.mxu0 0.0
    %1340 = vmatpush2.msra.mxu0 0.0
    %1341 = vmatprep.subr.mxu0 0.0
    %1342 = vmatpush2.msra.mxu0 0.0
    %1343 = vmatprep.subr.mxu0 0.0
    %1344 = vmatpush2.msra.mxu0 0.0
    %1345 = vmatprep.mubr.f32.mxu0 0.0
    %1346 = vmatmul.mubr.f32.gmra.mxu0 %v412
    %v1347 = vpop.f32.mrf.mxu0
    %v1348 = vadd.f32 0.0, %v1347
    %v1349 = vpop.f32.mrf.mxu0
    %1350 = vmatprep.mubr.f32.mxu0 0.0
    %1351 = vmatmul.mubr.f32.gmra.mxu0 %v415
    %v1352 = vpop.f32.mrf.mxu0
    %v1353 = vadd.f32 0.0, %v1352
    %v1354 = vpop.f32.mrf.mxu0
    %1355 = vmatprep.mubr.f32.mxu0 0.0
    %1356 = vmatmul.mubr.f32.gmra.mxu0 %v418
    %v1357 = vpop.f32.mrf.mxu0
    %v1358 = vadd.f32 0.0, %v1357
    %v1359 = vpop.f32.mrf.mxu0
    %1360 = vmatprep.mubr.f32.mxu0 0.0
    %1361 = vmatmul.mubr.f32.gmra.mxu0 %v421
    %v1362 = vpop.f32.mrf.mxu0
    %v1363 = vadd.f32 0.0, %v1362
    %v1364 = vpop.f32.mrf.mxu0
    %1365 = vmatprep.mubr.f32.mxu0 0.0
    %1366 = vmatmul.mubr.f32.gmra.mxu0 %v424
    %v1367 = vpop.f32.mrf.mxu0
    %v1368 = vadd.f32 0.0, %v1367
    %v1369 = vpop.f32.mrf.mxu0
    %1370 = vmatprep.mubr.f32.mxu0 0.0
    %1371 = vmatmul.mubr.f32.gmra.mxu0 %v427
    %v1372 = vpop.f32.mrf.mxu0
    %v1373 = vadd.f32 0.0, %v1372
    %v1374 = vpop.f32.mrf.mxu0
    %1375 = vmatprep.mubr.f32.mxu0 0.0
    %1376 = vmatmul.mubr.f32.gmra.mxu0 %v430
    %v1377 = vpop.f32.mrf.mxu0
    %v1378 = vadd.f32 0.0, %v1377
    %v1379 = vpop.f32.mrf.mxu0
    %1380 = vmatprep.mubr.f32.mxu0 0.0
    %1381 = vmatmul.mubr.f32.gmra.mxu0 %v433
    %v1382 = vpop.f32.mrf.mxu0
    %v1383 = vadd.f32 0.0, %v1382
    %v1384 = vpop.f32.mrf.mxu0
    %1385 = vmatprep.mubr.f32.mxu0 0.0
    %1386 = vmatmul.mubr.f32.gmra.mxu0 %v436
    %v1387 = vpop.f32.mrf.mxu0
    %v1388 = vadd.f32 0.0, %v1387
    %v1389 = vpop.f32.mrf.mxu0
    %1390 = vmatprep.mubr.f32.mxu0 0.0
    %1391 = vmatmul.mubr.f32.gmra.mxu0 %v439
    %v1392 = vpop.f32.mrf.mxu0
    %v1393 = vadd.f32 0.0, %v1392
    %v1394 = vpop.f32.mrf.mxu0
    %1395 = vmatprep.mubr.f32.mxu0 0.0
    %1396 = vmatmul.mubr.f32.gmra.mxu0 %v442
    %v1397 = vpop.f32.mrf.mxu0
    %v1398 = vadd.f32 0.0, %v1397
    %v1399 = vpop.f32.mrf.mxu0
    %1400 = vmatprep.mubr.f32.mxu0 0.0
    %1401 = vmatmul.mubr.f32.gmra.mxu0 %v445
    %v1402 = vpop.f32.mrf.mxu0
    %v1403 = vadd.f32 0.0, %v1402
    %v1404 = vpop.f32.mrf.mxu0
    %1405 = vmatprep.mubr.f32.mxu0 0.0
    %1406 = vmatmul.mubr.f32.gmra.mxu0 %v448
    %v1407 = vpop.f32.mrf.mxu0
    %v1408 = vadd.f32 0.0, %v1407
    %v1409 = vpop.f32.mrf.mxu0
    %1410 = vmatprep.mubr.f32.mxu0 0.0
    %1411 = vmatmul.mubr.f32.gmra.mxu0 %v451
    %v1412 = vpop.f32.mrf.mxu0
    %v1413 = vadd.f32 0.0, %v1412
    %v1414 = vpop.f32.mrf.mxu0
    %1415 = vmatprep.mubr.f32.mxu0 0.0
    %1416 = vmatmul.mubr.f32.gmra.mxu0 %v454
    %v1417 = vpop.f32.mrf.mxu0
    %v1418 = vadd.f32 0.0, %v1417
    %v1419 = vpop.f32.mrf.mxu0
    %1420 = vmatprep.mubr.f32.mxu0 0.0
    %1421 = vmatmul.mubr.f32.gmra.mxu0 %v457
    %v1422 = vpop.f32.mrf.mxu0
    %v1423 = vadd.f32 0.0, %v1422
    %v1424 = vpop.f32.mrf.mxu0
    %1425 = vmatprep.mubr.f32.mxu0 0.0
    %1426 = vmatmul.mubr.f32.gmra.mxu0 %v460
    %v1427 = vpop.f32.mrf.mxu0
    %v1428 = vadd.f32 0.0, %v1427
    %v1429 = vpop.f32.mrf.mxu0
    %1430 = vmatprep.mubr.f32.mxu0 0.0
    %1431 = vmatmul.mubr.f32.gmra.mxu0 %v463
    %v1432 = vpop.f32.mrf.mxu0
    %v1433 = vadd.f32 0.0, %v1432
    %v1434 = vpop.f32.mrf.mxu0
    %1435 = vmatprep.mubr.f32.mxu0 0.0
    %1436 = vmatmul.mubr.f32.gmra.mxu0 %v466
    %v1437 = vpop.f32.mrf.mxu0
    %v1438 = vadd.f32 0.0, %v1437
    %v1439 = vpop.f32.mrf.mxu0
    %1440 = vmatprep.mubr.f32.mxu0 0.0
    %1441 = vmatmul.mubr.f32.gmra.mxu0 %v469
    %v1442 = vpop.f32.mrf.mxu0
    %v1443 = vadd.f32 0.0, %v1442
    %v1444 = vpop.f32.mrf.mxu0
    %1445 = vmatprep.mubr.f32.mxu0 0.0
    %1446 = vmatmul.mubr.f32.gmra.mxu0 %v472
    %v1447 = vpop.f32.mrf.mxu0
    %v1448 = vadd.f32 0.0, %v1447
    %v1449 = vpop.f32.mrf.mxu0
    %1450 = vmatprep.mubr.f32.mxu0 0.0
    %1451 = vmatmul.mubr.f32.gmra.mxu0 %v475
    %v1452 = vpop.f32.mrf.mxu0
    %v1453 = vadd.f32 0.0, %v1452
    %v1454 = vpop.f32.mrf.mxu0
    %1455 = vmatprep.mubr.f32.mxu0 0.0
    %1456 = vmatmul.mubr.f32.gmra.mxu0 %v478
    %v1457 = vpop.f32.mrf.mxu0
    %v1458 = vadd.f32 0.0, %v1457
    %v1459 = vpop.f32.mrf.mxu0
    %1460 = vmatprep.mubr.f32.mxu0 0.0
    %1461 = vmatmul.mubr.f32.gmra.mxu0 %v481
    %v1462 = vpop.f32.mrf.mxu0
    %v1463 = vadd.f32 0.0, %v1462
    %v1464 = vpop.f32.mrf.mxu0
    %1465 = vmatprep.mubr.f32.mxu0 0.0
    %1466 = vmatmul.mubr.f32.gmra.mxu0 %v484
    %v1467 = vpop.f32.mrf.mxu0
    %v1468 = vadd.f32 0.0, %v1467
    %v1469 = vpop.f32.mrf.mxu0
    %1470 = vmatprep.mubr.f32.mxu0 0.0
    %1471 = vmatmul.mubr.f32.gmra.mxu0 %v487
    %v1472 = vpop.f32.mrf.mxu0
    %v1473 = vadd.f32 0.0, %v1472
    %v1474 = vpop.f32.mrf.mxu0
    %1475 = vmatprep.mubr.f32.mxu0 0.0
    %1476 = vmatmul.mubr.f32.gmra.mxu0 %v490
    %v1477 = vpop.f32.mrf.mxu0
    %v1478 = vadd.f32 0.0, %v1477
    %v1479 = vpop.f32.mrf.mxu0
    %1480 = vmatprep.mubr.f32.mxu0 0.0
    %1481 = vmatmul.mubr.f32.gmra.mxu0 %v493
    %v1482 = vpop.f32.mrf.mxu0
    %v1483 = vadd.f32 0.0, %v1482
    %v1484 = vpop.f32.mrf.mxu0
    %1485 = vmatprep.mubr.f32.mxu0 0.0
    %1486 = vmatmul.mubr.f32.gmra.mxu0 %v496
    %v1487 = vpop.f32.mrf.mxu0
    %v1488 = vadd.f32 0.0, %v1487
    %v1489 = vpop.f32.mrf.mxu0
    %1490 = vmatprep.mubr.f32.mxu0 0.0
    %1491 = vmatmul.mubr.f32.gmra.mxu0 %v499
    %v1492 = vpop.f32.mrf.mxu0
    %v1493 = vadd.f32 0.0, %v1492
    %v1494 = vpop.f32.mrf.mxu0
    %1495 = vmatprep.mubr.f32.mxu0 0.0
    %1496 = vmatmul.mubr.f32.gmra.mxu0 %v990
    %v1497 = vpop.f32.mrf.mxu0
    %v1498 = vadd.f32 0.0, %v1497
    %v1499 = vpop.f32.mrf.mxu0
    %1500 = vmatprep.mubr.f32.mxu0 0.0
    %1501 = vmatmul.mubr.f32.gmra.mxu0 %v993
    %v1502 = vpop.f32.mrf.mxu0
    %v1503 = vadd.f32 0.0, %v1502
    %v1504 = vpop.f32.mrf.mxu0
    %1505 = vmatprep.mubr.f32.mxu0 0.0
    %1506 = vmatmul.mubr.f32.gmra.mxu0 %v1273
    %v1507 = vpop.f32.mrf.mxu0
    %v1508 = vadd.f32 0.0, %v1507
    %v1509 = vpop.f32.mrf.mxu0
    %1510 = vmatprep.mubr.f32.mxu0 0.0
    %1511 = vmatmul.mubr.f32.gmra.mxu0 %v1276
    %v1512 = vpop.f32.mrf.mxu0
    %v1513 = vadd.f32 0.0, %v1512
    %v1514 = vpop.f32.mrf.mxu0
    %1515 = vdwg.mxu0
    %v1516 = vadd.f32 %v1233, %v1348
    %v1517 = vadd.f32 %v1234, %v1353
    %v1518 = vadd.f32 %v1235, %v1358
    %v1519 = vadd.f32 %v1236, %v1363
    %v1520 = vadd.f32 %v1237, %v1368
    %v1521 = vadd.f32 %v1238, %v1373
    %v1522 = vadd.f32 %v1239, %v1378
    %v1523 = vadd.f32 %v1240, %v1383
    %v1524 = vadd.f32 %v1241, %v1388
    %v1525 = vadd.f32 %v1242, %v1393
    %v1526 = vadd.f32 %v1243, %v1398
    %v1527 = vadd.f32 %v1244, %v1403
    %v1528 = vadd.f32 %v1245, %v1408
    %v1529 = vadd.f32 %v1246, %v1413
    %v1530 = vadd.f32 %v1247, %v1418
    %v1531 = vadd.f32 %v1248, %v1423
    %v1532 = vadd.f32 %v1249, %v1428
    %v1533 = vadd.f32 %v1250, %v1433
    %v1534 = vadd.f32 %v1251, %v1438
    %v1535 = vadd.f32 %v1252, %v1443
    %v1536 = vadd.f32 %v1253, %v1448
    %v1537 = vadd.f32 %v1254, %v1453
    %v1538 = vadd.f32 %v1255, %v1458
    %v1539 = vadd.f32 %v1256, %v1463
    %v1540 = vadd.f32 %v1257, %v1468
    %v1541 = vadd.f32 %v1258, %v1473
    %v1542 = vadd.f32 %v1259, %v1478
    %v1543 = vadd.f32 %v1260, %v1483
    %v1544 = vadd.f32 %v1261, %v1488
    %v1545 = vadd.f32 %v1262, %v1493
    %v1546 = vadd.f32 %v1263, %v1498
    %v1547 = vadd.f32 %v1264, %v1503
    %v1548 = vadd.f32 %v1265, %v1508
    %v1549 = vadd.f32 %v1266, %v1513
    %s1550 = scalar_lea.vmem %s1, 128
    %v1551 = vld [vmem:[%s1550] sm:$0xff]
    %v1552 = vld [vmem:[%s1550 + $0x8] sm:$0xff]
    %v1553 = vld [vmem:[%s1550 + $0x10] sm:$0xff]
    %v1554 = vld [vmem:[%s1550 + $0x18] sm:$0x3f]
    %v1556 = vsel %vm398, %v387, 0
    %v1559 = vsel %vm398, %v388, 0
    %v1562 = vsel %vm501, %v1554, 0
    %1564 = vmatprep.subr.mxu0 0.0
    %1565 = vmatpush1.msra.mxu0 0.0
    %1566 = vmatprep.subr.mxu0 0.0
    %1567 = vmatpush1.msra.mxu0 0.0
    %1568 = vmatprep.subr.mxu0 0.0
    %1569 = vmatpush1.msra.mxu0 0.0
    %1570 = vmatprep.subr.mxu0 0.0
    %1571 = vmatpush1.msra.mxu0 0.0
    %1572 = vmatprep.subr.mxu0 0.0
    %1573 = vmatpush1.msra.mxu0 0.0
    %1574 = vmatprep.subr.mxu0 0.0
    %1575 = vmatpush1.msra.mxu0 0.0
    %1576 = vmatprep.subr.mxu0 0.0
    %1577 = vmatpush1.msra.mxu0 0.0
    %1578 = vmatprep.subr.mxu0 0.0
    %1579 = vmatpush1.msra.mxu0 0.0
    %1580 = vmatprep.subr.mxu0 0.0
    %1581 = vmatpush1.msra.mxu0 0.0
    %1582 = vmatprep.subr.mxu0 0.0
    %1583 = vmatpush1.msra.mxu0 0.0
    %1584 = vmatprep.subr.mxu0 0.0
    %1585 = vmatpush1.msra.mxu0 0.0
    %1586 = vmatprep.subr.mxu0 0.0
    %1587 = vmatpush1.msra.mxu0 0.0
    %1588 = vmatprep.subr.mxu0 0.0
    %1589 = vmatpush1.msra.mxu0 %v1562
    %1590 = vmatprep.subr.mxu0 0.0
    %1591 = vmatpush1.msra.mxu0 %v1553
    %1592 = vmatprep.subr.mxu0 0.0
    %1593 = vmatpush1.msra.mxu0 %v1552
    %1594 = vmatprep.subr.mxu0 0.0
    %1595 = vmatpush1.msra.mxu0 %v1551
    %1596 = vmatprep.subr.mxu0 0.0
    %1597 = vmatpush2.msra.mxu0 0.0
    %1598 = vmatprep.subr.mxu0 0.0
    %1599 = vmatpush2.msra.mxu0 0.0
    %1600 = vmatprep.subr.mxu0 0.0
    %1601 = vmatpush2.msra.mxu0 0.0
    %1602 = vmatprep.subr.mxu0 0.0
    %1603 = vmatpush2.msra.mxu0 0.0
    %1604 = vmatprep.subr.mxu0 0.0
    %1605 = vmatpush2.msra.mxu0 0.0
    %1606 = vmatprep.subr.mxu0 0.0
    %1607 = vmatpush2.msra.mxu0 0.0
    %1608 = vmatprep.subr.mxu0 0.0
    %1609 = vmatpush2.msra.mxu0 0.0
    %1610 = vmatprep.subr.mxu0 0.0
    %1611 = vmatpush2.msra.mxu0 0.0
    %1612 = vmatprep.subr.mxu0 0.0
    %1613 = vmatpush2.msra.mxu0 0.0
    %1614 = vmatprep.subr.mxu0 0.0
    %1615 = vmatpush2.msra.mxu0 0.0
    %1616 = vmatprep.subr.mxu0 0.0
    %1617 = vmatpush2.msra.mxu0 0.0
    %1618 = vmatprep.subr.mxu0 0.0
    %1619 = vmatpush2.msra.mxu0 0.0
    %1620 = vmatprep.subr.mxu0 0.0
    %1621 = vmatpush2.msra.mxu0 0.0
    %1622 = vmatprep.subr.mxu0 0.0
    %1623 = vmatpush2.msra.mxu0 0.0
    %1624 = vmatprep.subr.mxu0 0.0
    %1625 = vmatpush2.msra.mxu0 0.0
    %1626 = vmatprep.subr.mxu0 0.0
    %1627 = vmatpush2.msra.mxu0 0.0
    %1628 = vmatprep.mubr.f32.mxu0 0.0
    %1629 = vmatmul.mubr.f32.gmra.mxu0 %v418
    %v1630 = vpop.f32.mrf.mxu0
    %v1631 = vadd.f32 0.0, %v1630
    %v1632 = vpop.f32.mrf.mxu0
    %1633 = vmatprep.mubr.f32.mxu0 0.0
    %1634 = vmatmul.mubr.f32.gmra.mxu0 %v421
    %v1635 = vpop.f32.mrf.mxu0
    %v1636 = vadd.f32 0.0, %v1635
    %v1637 = vpop.f32.mrf.mxu0
    %1638 = vmatprep.mubr.f32.mxu0 0.0
    %1639 = vmatmul.mubr.f32.gmra.mxu0 %v424
    %v1640 = vpop.f32.mrf.mxu0
    %v1641 = vadd.f32 0.0, %v1640
    %v1642 = vpop.f32.mrf.mxu0
    %1643 = vmatprep.mubr.f32.mxu0 0.0
    %1644 = vmatmul.mubr.f32.gmra.mxu0 %v427
    %v1645 = vpop.f32.mrf.mxu0
    %v1646 = vadd.f32 0.0, %v1645
    %v1647 = vpop.f32.mrf.mxu0
    %1648 = vmatprep.mubr.f32.mxu0 0.0
    %1649 = vmatmul.mubr.f32.gmra.mxu0 %v430
    %v1650 = vpop.f32.mrf.mxu0
    %v1651 = vadd.f32 0.0, %v1650
    %v1652 = vpop.f32.mrf.mxu0
    %1653 = vmatprep.mubr.f32.mxu0 0.0
    %1654 = vmatmul.mubr.f32.gmra.mxu0 %v433
    %v1655 = vpop.f32.mrf.mxu0
    %v1656 = vadd.f32 0.0, %v1655
    %v1657 = vpop.f32.mrf.mxu0
    %1658 = vmatprep.mubr.f32.mxu0 0.0
    %1659 = vmatmul.mubr.f32.gmra.mxu0 %v436
    %v1660 = vpop.f32.mrf.mxu0
    %v1661 = vadd.f32 0.0, %v1660
    %v1662 = vpop.f32.mrf.mxu0
    %1663 = vmatprep.mubr.f32.mxu0 0.0
    %1664 = vmatmul.mubr.f32.gmra.mxu0 %v439
    %v1665 = vpop.f32.mrf.mxu0
    %v1666 = vadd.f32 0.0, %v1665
    %v1667 = vpop.f32.mrf.mxu0
    %1668 = vmatprep.mubr.f32.mxu0 0.0
    %1669 = vmatmul.mubr.f32.gmra.mxu0 %v442
    %v1670 = vpop.f32.mrf.mxu0
    %v1671 = vadd.f32 0.0, %v1670
    %v1672 = vpop.f32.mrf.mxu0
    %1673 = vmatprep.mubr.f32.mxu0 0.0
    %1674 = vmatmul.mubr.f32.gmra.mxu0 %v445
    %v1675 = vpop.f32.mrf.mxu0
    %v1676 = vadd.f32 0.0, %v1675
    %v1677 = vpop.f32.mrf.mxu0
    %1678 = vmatprep.mubr.f32.mxu0 0.0
    %1679 = vmatmul.mubr.f32.gmra.mxu0 %v448
    %v1680 = vpop.f32.mrf.mxu0
    %v1681 = vadd.f32 0.0, %v1680
    %v1682 = vpop.f32.mrf.mxu0
    %1683 = vmatprep.mubr.f32.mxu0 0.0
    %1684 = vmatmul.mubr.f32.gmra.mxu0 %v451
    %v1685 = vpop.f32.mrf.mxu0
    %v1686 = vadd.f32 0.0, %v1685
    %v1687 = vpop.f32.mrf.mxu0
    %1688 = vmatprep.mubr.f32.mxu0 0.0
    %1689 = vmatmul.mubr.f32.gmra.mxu0 %v454
    %v1690 = vpop.f32.mrf.mxu0
    %v1691 = vadd.f32 0.0, %v1690
    %v1692 = vpop.f32.mrf.mxu0
    %1693 = vmatprep.mubr.f32.mxu0 0.0
    %1694 = vmatmul.mubr.f32.gmra.mxu0 %v457
    %v1695 = vpop.f32.mrf.mxu0
    %v1696 = vadd.f32 0.0, %v1695
    %v1697 = vpop.f32.mrf.mxu0
    %1698 = vmatprep.mubr.f32.mxu0 0.0
    %1699 = vmatmul.mubr.f32.gmra.mxu0 %v460
    %v1700 = vpop.f32.mrf.mxu0
    %v1701 = vadd.f32 0.0, %v1700
    %v1702 = vpop.f32.mrf.mxu0
    %1703 = vmatprep.mubr.f32.mxu0 0.0
    %1704 = vmatmul.mubr.f32.gmra.mxu0 %v463
    %v1705 = vpop.f32.mrf.mxu0
    %v1706 = vadd.f32 0.0, %v1705
    %v1707 = vpop.f32.mrf.mxu0
    %1708 = vmatprep.mubr.f32.mxu0 0.0
    %1709 = vmatmul.mubr.f32.gmra.mxu0 %v466
    %v1710 = vpop.f32.mrf.mxu0
    %v1711 = vadd.f32 0.0, %v1710
    %v1712 = vpop.f32.mrf.mxu0
    %1713 = vmatprep.mubr.f32.mxu0 0.0
    %1714 = vmatmul.mubr.f32.gmra.mxu0 %v469
    %v1715 = vpop.f32.mrf.mxu0
    %v1716 = vadd.f32 0.0, %v1715
    %v1717 = vpop.f32.mrf.mxu0
    %1718 = vmatprep.mubr.f32.mxu0 0.0
    %1719 = vmatmul.mubr.f32.gmra.mxu0 %v472
    %v1720 = vpop.f32.mrf.mxu0
    %v1721 = vadd.f32 0.0, %v1720
    %v1722 = vpop.f32.mrf.mxu0
    %1723 = vmatprep.mubr.f32.mxu0 0.0
    %1724 = vmatmul.mubr.f32.gmra.mxu0 %v475
    %v1725 = vpop.f32.mrf.mxu0
    %v1726 = vadd.f32 0.0, %v1725
    %v1727 = vpop.f32.mrf.mxu0
    %1728 = vmatprep.mubr.f32.mxu0 0.0
    %1729 = vmatmul.mubr.f32.gmra.mxu0 %v478
    %v1730 = vpop.f32.mrf.mxu0
    %v1731 = vadd.f32 0.0, %v1730
    %v1732 = vpop.f32.mrf.mxu0
    %1733 = vmatprep.mubr.f32.mxu0 0.0
    %1734 = vmatmul.mubr.f32.gmra.mxu0 %v481
    %v1735 = vpop.f32.mrf.mxu0
    %v1736 = vadd.f32 0.0, %v1735
    %v1737 = vpop.f32.mrf.mxu0
    %1738 = vmatprep.mubr.f32.mxu0 0.0
    %1739 = vmatmul.mubr.f32.gmra.mxu0 %v484
    %v1740 = vpop.f32.mrf.mxu0
    %v1741 = vadd.f32 0.0, %v1740
    %v1742 = vpop.f32.mrf.mxu0
    %1743 = vmatprep.mubr.f32.mxu0 0.0
    %1744 = vmatmul.mubr.f32.gmra.mxu0 %v487
    %v1745 = vpop.f32.mrf.mxu0
    %v1746 = vadd.f32 0.0, %v1745
    %v1747 = vpop.f32.mrf.mxu0
    %1748 = vmatprep.mubr.f32.mxu0 0.0
    %1749 = vmatmul.mubr.f32.gmra.mxu0 %v490
    %v1750 = vpop.f32.mrf.mxu0
    %v1751 = vadd.f32 0.0, %v1750
    %v1752 = vpop.f32.mrf.mxu0
    %1753 = vmatprep.mubr.f32.mxu0 0.0
    %1754 = vmatmul.mubr.f32.gmra.mxu0 %v493
    %v1755 = vpop.f32.mrf.mxu0
    %v1756 = vadd.f32 0.0, %v1755
    %v1757 = vpop.f32.mrf.mxu0
    %1758 = vmatprep.mubr.f32.mxu0 0.0
    %1759 = vmatmul.mubr.f32.gmra.mxu0 %v496
    %v1760 = vpop.f32.mrf.mxu0
    %v1761 = vadd.f32 0.0, %v1760
    %v1762 = vpop.f32.mrf.mxu0
    %1763 = vmatprep.mubr.f32.mxu0 0.0
    %1764 = vmatmul.mubr.f32.gmra.mxu0 %v499
    %v1765 = vpop.f32.mrf.mxu0
    %v1766 = vadd.f32 0.0, %v1765
    %v1767 = vpop.f32.mrf.mxu0
    %1768 = vmatprep.mubr.f32.mxu0 0.0
    %1769 = vmatmul.mubr.f32.gmra.mxu0 %v990
    %v1770 = vpop.f32.mrf.mxu0
    %v1771 = vadd.f32 0.0, %v1770
    %v1772 = vpop.f32.mrf.mxu0
    %1773 = vmatprep.mubr.f32.mxu0 0.0
    %1774 = vmatmul.mubr.f32.gmra.mxu0 %v993
    %v1775 = vpop.f32.mrf.mxu0
    %v1776 = vadd.f32 0.0, %v1775
    %v1777 = vpop.f32.mrf.mxu0
    %1778 = vmatprep.mubr.f32.mxu0 0.0
    %1779 = vmatmul.mubr.f32.gmra.mxu0 %v1273
    %v1780 = vpop.f32.mrf.mxu0
    %v1781 = vadd.f32 0.0, %v1780
    %v1782 = vpop.f32.mrf.mxu0
    %1783 = vmatprep.mubr.f32.mxu0 0.0
    %1784 = vmatmul.mubr.f32.gmra.mxu0 %v1276
    %v1785 = vpop.f32.mrf.mxu0
    %v1786 = vadd.f32 0.0, %v1785
    %v1787 = vpop.f32.mrf.mxu0
    %1788 = vmatprep.mubr.f32.mxu0 0.0
    %1789 = vmatmul.mubr.f32.gmra.mxu0 %v1556
    %v1790 = vpop.f32.mrf.mxu0
    %v1791 = vadd.f32 0.0, %v1790
    %v1792 = vpop.f32.mrf.mxu0
    %1793 = vmatprep.mubr.f32.mxu0 0.0
    %1794 = vmatmul.mubr.f32.gmra.mxu0 %v1559
    %v1795 = vpop.f32.mrf.mxu0
    %v1796 = vadd.f32 0.0, %v1795
    %v1797 = vpop.f32.mrf.mxu0
    %1798 = vdwg.mxu0
    %v1799 = vadd.f32 %v1516, %v1631
    %v1800 = vadd.f32 %v1517, %v1636
    %v1801 = vadd.f32 %v1518, %v1641
    %v1802 = vadd.f32 %v1519, %v1646
    %v1803 = vadd.f32 %v1520, %v1651
    %v1804 = vadd.f32 %v1521, %v1656
    %v1805 = vadd.f32 %v1522, %v1661
    %v1806 = vadd.f32 %v1523, %v1666
    %v1807 = vadd.f32 %v1524, %v1671
    %v1808 = vadd.f32 %v1525, %v1676
    %v1809 = vadd.f32 %v1526, %v1681
    %v1810 = vadd.f32 %v1527, %v1686
    %v1811 = vadd.f32 %v1528, %v1691
    %v1812 = vadd.f32 %v1529, %v1696
    %v1813 = vadd.f32 %v1530, %v1701
    %v1814 = vadd.f32 %v1531, %v1706
    %v1815 = vadd.f32 %v1532, %v1711
    %v1816 = vadd.f32 %v1533, %v1716
    %v1817 = vadd.f32 %v1534, %v1721
    %v1818 = vadd.f32 %v1535, %v1726
    %v1819 = vadd.f32 %v1536, %v1731
    %v1820 = vadd.f32 %v1537, %v1736
    %v1821 = vadd.f32 %v1538, %v1741
    %v1822 = vadd.f32 %v1539, %v1746
    %v1823 = vadd.f32 %v1540, %v1751
    %v1824 = vadd.f32 %v1541, %v1756
    %v1825 = vadd.f32 %v1542, %v1761
    %v1826 = vadd.f32 %v1543, %v1766
    %v1827 = vadd.f32 %v1544, %v1771
    %v1828 = vadd.f32 %v1545, %v1776
    %v1829 = vadd.f32 %v1546, %v1781
    %v1830 = vadd.f32 %v1547, %v1786
    %v1831 = vadd.f32 %v1548, %v1791
    %v1832 = vadd.f32 %v1549, %v1796
    %vm1833 = vcmask 261120
    %v1834 = vsel %vm1833, %v1799, -inf
    %v1835 = vsel %vm1833, %v1801, -inf
    %v1836 = vsel %vm1833, %v1803, -inf
    %v1837 = vmax.f32 %v1834, %v1836
    %v1838 = vsel %vm1833, %v1805, -inf
    %v1839 = vmax.f32 %v1835, %v1838
    %v1840 = vsel %vm1833, %v1807, -inf
    %v1841 = vmax.f32 %v1837, %v1840
    %v1842 = vsel %vm1833, %v1809, -inf
    %v1843 = vmax.f32 %v1839, %v1842
    %v1844 = vsel %vm1833, %v1811, -inf
    %v1845 = vmax.f32 %v1841, %v1844
    %v1846 = vsel %vm1833, %v1813, -inf
    %v1847 = vmax.f32 %v1843, %v1846
    %v1848 = vsel %vm1833, %v1815, -inf
    %v1849 = vmax.f32 %v1845, %v1848
    %v1850 = vsel %vm1833, %v1817, -inf
    %v1851 = vmax.f32 %v1847, %v1850
    %v1852 = vsel %vm1833, %v1819, -inf
    %v1853 = vmax.f32 %v1849, %v1852
    %v1854 = vsel %vm1833, %v1821, -inf
    %v1855 = vmax.f32 %v1851, %v1854
    %v1856 = vsel %vm1833, %v1823, -inf
    %v1857 = vmax.f32 %v1853, %v1856
    %v1858 = vsel %vm1833, %v1825, -inf
    %v1859 = vmax.f32 %v1855, %v1858
    %v1860 = vsel %vm1833, %v1827, -inf
    %v1861 = vmax.f32 %v1857, %v1860
    %v1862 = vsel %vm1833, %v1829, -inf
    %v1863 = vmax.f32 %v1859, %v1862
    %v1864 = vsel %vm1833, %v1831, -inf
    %v1865 = vmax.f32 %v1861, %v1864
    %v1866 = vmax.f32 %v1865, %v1863
    %v1867 = vsel %vm1833, %v1800, -inf
    %v1868 = vsel %vm1833, %v1802, -inf
    %v1869 = vsel %vm1833, %v1804, -inf
    %v1870 = vmax.f32 %v1867, %v1869
    %v1871 = vsel %vm1833, %v1806, -inf
    %v1872 = vmax.f32 %v1868, %v1871
    %v1873 = vsel %vm1833, %v1808, -inf
    %v1874 = vmax.f32 %v1870, %v1873
    %v1875 = vsel %vm1833, %v1810, -inf
    %v1876 = vmax.f32 %v1872, %v1875
    %v1877 = vsel %vm1833, %v1812, -inf
    %v1878 = vmax.f32 %v1874, %v1877
    %v1879 = vsel %vm1833, %v1814, -inf
    %v1880 = vmax.f32 %v1876, %v1879
    %v1881 = vsel %vm1833, %v1816, -inf
    %v1882 = vmax.f32 %v1878, %v1881
    %v1883 = vsel %vm1833, %v1818, -inf
    %v1884 = vmax.f32 %v1880, %v1883
    %v1885 = vsel %vm1833, %v1820, -inf
    %v1886 = vmax.f32 %v1882, %v1885
    %v1887 = vsel %vm1833, %v1822, -inf
    %v1888 = vmax.f32 %v1884, %v1887
    %v1889 = vsel %vm1833, %v1824, -inf
    %v1890 = vmax.f32 %v1886, %v1889
    %v1891 = vsel %vm1833, %v1826, -inf
    %v1892 = vmax.f32 %v1888, %v1891
    %v1893 = vsel %vm1833, %v1828, -inf
    %v1894 = vmax.f32 %v1890, %v1893
    %v1895 = vsel %vm1833, %v1830, -inf
    %v1896 = vmax.f32 %v1892, %v1895
    %v1897 = vsel %vm1833, %v1832, -inf
    %v1898 = vmax.f32 %v1894, %v1897
    %v1899 = vmax.f32 %v1898, %v1896
    %v1900 = vld [vmem:[%s2] sm:$0x1]
    %v1902 = vlaneseq
    %v1903 = vshrl.u32 %v1902, 7
    %v1904 = vsub.s32 0, %v1903
    %v1905 = vrot.slane %v1900, %v1904
    %v1907 = vadd.f32 %v1866, %v1905
    %v1908 = vadd.f32 %v1899, %v1905
    %v1909 = vmax.f32 %v1907, 0.0
    %v1910 = vmax.f32 %v1908, 0.0
    %v1911 = vld [vmem:[%s3] sm:$0xff]
    %v1912 = vld [vmem:[%s3 + $0x8] sm:$0xff]
    %v1913 = vld [vmem:[%s3 + $0x10] sm:$0xff]
    %v1914 = vld [vmem:[%s3 + $0x18] sm:$0xff]
    %v1915 = vld [vmem:[%s4] sm:$0x1]
    %v1917 = vlaneseq
    %v1918 = vshrl.u32 %v1917, 7
    %v1919 = vsub.s32 0, %v1918
    %v1920 = vrot.slane %v1915, %v1919
    %v1923 = vsel %vm1833, %v1909, 0
    %v1926 = vsel %vm1833, %v1910, 0
    %1928 = vmatprep.subr.mxu0 0.0
    %1929 = vmatpush1.msra.mxu0 0.0
    %1930 = vmatprep.subr.mxu0 0.0
    %1931 = vmatpush1.msra.mxu0 0.0
    %1932 = vmatprep.subr.mxu0 0.0
    %1933 = vmatpush1.msra.mxu0 0.0
    %1934 = vmatprep.subr.mxu0 0.0
    %1935 = vmatpush1.msra.mxu0 0.0
    %1936 = vmatprep.subr.mxu0 0.0
    %1937 = vmatpush1.msra.mxu0 0.0
    %1938 = vmatprep.subr.mxu0 0.0
    %1939 = vmatpush1.msra.mxu0 0.0
    %1940 = vmatprep.subr.mxu0 0.0
    %1941 = vmatpush1.msra.mxu0 0.0
    %1942 = vmatprep.subr.mxu0 0.0
    %1943 = vmatpush1.msra.mxu0 0.0
    %1944 = vmatprep.subr.mxu0 0.0
    %1945 = vmatpush1.msra.mxu0 0.0
    %1946 = vmatprep.subr.mxu0 0.0
    %1947 = vmatpush1.msra.mxu0 0.0
    %1948 = vmatprep.subr.mxu0 0.0
    %1949 = vmatpush1.msra.mxu0 0.0
    %1950 = vmatprep.subr.mxu0 0.0
    %1951 = vmatpush1.msra.mxu0 0.0
    %1952 = vmatprep.subr.mxu0 0.0
    %1953 = vmatpush1.msra.mxu0 %v1914
    %1954 = vmatprep.subr.mxu0 0.0
    %1955 = vmatpush1.msra.mxu0 %v1913
    %1956 = vmatprep.subr.mxu0 0.0
    %1957 = vmatpush1.msra.mxu0 %v1912
    %1958 = vmatprep.subr.mxu0 0.0
    %1959 = vmatpush1.msra.mxu0 %v1911
    %1960 = vmatprep.subr.mxu0 0.0
    %1961 = vmatpush2.msra.mxu0 0.0
    %1962 = vmatprep.subr.mxu0 0.0
    %1963 = vmatpush2.msra.mxu0 0.0
    %1964 = vmatprep.subr.mxu0 0.0
    %1965 = vmatpush2.msra.mxu0 0.0
    %1966 = vmatprep.subr.mxu0 0.0
    %1967 = vmatpush2.msra.mxu0 0.0
    %1968 = vmatprep.subr.mxu0 0.0
    %1969 = vmatpush2.msra.mxu0 0.0
    %1970 = vmatprep.subr.mxu0 0.0
    %1971 = vmatpush2.msra.mxu0 0.0
    %1972 = vmatprep.subr.mxu0 0.0
    %1973 = vmatpush2.msra.mxu0 0.0
    %1974 = vmatprep.subr.mxu0 0.0
    %1975 = vmatpush2.msra.mxu0 0.0
    %1976 = vmatprep.subr.mxu0 0.0
    %1977 = vmatpush2.msra.mxu0 0.0
    %1978 = vmatprep.subr.mxu0 0.0
    %1979 = vmatpush2.msra.mxu0 0.0
    %1980 = vmatprep.subr.mxu0 0.0
    %1981 = vmatpush2.msra.mxu0 0.0
    %1982 = vmatprep.subr.mxu0 0.0
    %1983 = vmatpush2.msra.mxu0 0.0
    %1984 = vmatprep.subr.mxu0 0.0
    %1985 = vmatpush2.msra.mxu0 0.0
    %1986 = vmatprep.subr.mxu0 0.0
    %1987 = vmatpush2.msra.mxu0 0.0
    %1988 = vmatprep.subr.mxu0 0.0
    %1989 = vmatpush2.msra.mxu0 0.0
    %1990 = vmatprep.subr.mxu0 0.0
    %1991 = vmatpush2.msra.mxu0 0.0
    %1992 = vmatprep.mubr.f32.mxu0 0.0
    %1993 = vmatmul.mubr.f32.gmra.mxu0 %v1923
    %v1994 = vpop.f32.mrf.mxu0
    %v1995 = vadd.f32 %v1920, %v1994
    %v1996 = vpop.f32.mrf.mxu0
    %1997 = vmatprep.mubr.f32.mxu0 0.0
    %1998 = vmatmul.mubr.f32.gmra.mxu0 %v1926
    %v1999 = vpop.f32.mrf.mxu0
    %v2000 = vadd.f32 %v1920, %v1999
    %v2001 = vpop.f32.mrf.mxu0
    %2002 = vdwg.mxu0
    %v2003 = vmax.f32 %v1995, 0.0
    %v2004 = vmax.f32 %v2000, 0.0
    %v2005 = vld [vmem:[%s5] sm:$0xff]
    %v2006 = vld [vmem:[%s5 + $0x8] sm:$0xff]
    %v2007 = vld [vmem:[%s5 + $0x10] sm:$0xff]
    %v2008 = vld [vmem:[%s5 + $0x18] sm:$0xff]
    %v2009 = vld [vmem:[%s6] sm:$0x1]
    %v2011 = vlaneseq
    %v2012 = vshrl.u32 %v2011, 7
    %v2013 = vsub.s32 0, %v2012
    %v2014 = vrot.slane %v2009, %v2013
    %2016 = vmatprep.subr.mxu0 0.0
    %2017 = vmatpush1.msra.mxu0 0.0
    %2018 = vmatprep.subr.mxu0 0.0
    %2019 = vmatpush1.msra.mxu0 0.0
    %2020 = vmatprep.subr.mxu0 0.0
    %2021 = vmatpush1.msra.mxu0 0.0
    %2022 = vmatprep.subr.mxu0 0.0
    %2023 = vmatpush1.msra.mxu0 0.0
    %2024 = vmatprep.subr.mxu0 0.0
    %2025 = vmatpush1.msra.mxu0 0.0
    %2026 = vmatprep.subr.mxu0 0.0
    %2027 = vmatpush1.msra.mxu0 0.0
    %2028 = vmatprep.subr.mxu0 0.0
    %2029 = vmatpush1.msra.mxu0 0.0
    %2030 = vmatprep.subr.mxu0 0.0
    %2031 = vmatpush1.msra.mxu0 0.0
    %2032 = vmatprep.subr.mxu0 0.0
    %2033 = vmatpush1.msra.mxu0 0.0
    %2034 = vmatprep.subr.mxu0 0.0
    %2035 = vmatpush1.msra.mxu0 0.0
    %2036 = vmatprep.subr.mxu0 0.0
    %2037 = vmatpush1.msra.mxu0 0.0
    %2038 = vmatprep.subr.mxu0 0.0
    %2039 = vmatpush1.msra.mxu0 0.0
    %2040 = vmatprep.subr.mxu0 0.0
    %2041 = vmatpush1.msra.mxu0 %v2008
    %2042 = vmatprep.subr.mxu0 0.0
    %2043 = vmatpush1.msra.mxu0 %v2007
    %2044 = vmatprep.subr.mxu0 0.0
    %2045 = vmatpush1.msra.mxu0 %v2006
    %2046 = vmatprep.subr.mxu0 0.0
    %2047 = vmatpush1.msra.mxu0 %v2005
    %2048 = vmatprep.subr.mxu0 0.0
    %2049 = vmatpush2.msra.mxu0 0.0
    %2050 = vmatprep.subr.mxu0 0.0
    %2051 = vmatpush2.msra.mxu0 0.0
    %2052 = vmatprep.subr.mxu0 0.0
    %2053 = vmatpush2.msra.mxu0 0.0
    %2054 = vmatprep.subr.mxu0 0.0
    %2055 = vmatpush2.msra.mxu0 0.0
    %2056 = vmatprep.subr.mxu0 0.0
    %2057 = vmatpush2.msra.mxu0 0.0
    %2058 = vmatprep.subr.mxu0 0.0
    %2059 = vmatpush2.msra.mxu0 0.0
    %2060 = vmatprep.subr.mxu0 0.0
    %2061 = vmatpush2.msra.mxu0 0.0
    %2062 = vmatprep.subr.mxu0 0.0
    %2063 = vmatpush2.msra.mxu0 0.0
    %2064 = vmatprep.subr.mxu0 0.0
    %2065 = vmatpush2.msra.mxu0 0.0
    %2066 = vmatprep.subr.mxu0 0.0
    %2067 = vmatpush2.msra.mxu0 0.0
    %2068 = vmatprep.subr.mxu0 0.0
    %2069 = vmatpush2.msra.mxu0 0.0
    %2070 = vmatprep.subr.mxu0 0.0
    %2071 = vmatpush2.msra.mxu0 0.0
    %2072 = vmatprep.subr.mxu0 0.0
    %2073 = vmatpush2.msra.mxu0 0.0
    %2074 = vmatprep.subr.mxu0 0.0
    %2075 = vmatpush2.msra.mxu0 0.0
    %2076 = vmatprep.subr.mxu0 0.0
    %2077 = vmatpush2.msra.mxu0 0.0
    %2078 = vmatprep.subr.mxu0 0.0
    %2079 = vmatpush2.msra.mxu0 0.0
    %2080 = vmatprep.mubr.f32.mxu0 0.0
    %2081 = vmatmul.mubr.f32.gmra.mxu0 %v1923
    %v2082 = vpop.f32.mrf.mxu0
    %v2083 = vadd.f32 %v2014, %v2082
    %v2084 = vpop.f32.mrf.mxu0
    %2085 = vmatprep.mubr.f32.mxu0 0.0
    %2086 = vmatmul.mubr.f32.gmra.mxu0 %v1926
    %v2087 = vpop.f32.mrf.mxu0
    %v2088 = vadd.f32 %v2014, %v2087
    %v2089 = vpop.f32.mrf.mxu0
    %2090 = vdwg.mxu0
    %v2091 = vxor.u32 %v2083, 2147483648
    %v2092 = vxor.u32 %v2088, 2147483648
    %v2093 = vmul.f32 %v2091, 1.442695
    %v2094 = vpow.pop %v2093
    %v2095 = vmul.f32 %v2092, 1.442695
    %v2096 = vpow.pop %v2095
    %v2097 = vadd.f32 %v2094, 1.0
    %v2098 = vadd.f32 %v2096, 1.0
    %v2099 = vrcp.pop %v2097
    %v2100 = vmul.f32 1.0, %v2099
    %v2101 = vrcp.pop %v2098
    %v2102 = vmul.f32 1.0, %v2101
    %v2103 = vmul.f32 %v2100, %v2003
    %v2104 = vmul.f32 %v2102, %v2004
    %v2105 = vsub.f32 1.0, %v2100
    %v2106 = vsub.f32 1.0, %v2102
    %v2107 = vmul.f32 %v2105, %v1909
    %v2108 = vmul.f32 %v2106, %v1910
    %v2109 = vadd.f32 %v2103, %v2107
    %v2110 = vadd.f32 %v2104, %v2108
    %2111 = vst.msk [vmem:[#allocation2] sm:$0xff] %vm1833, %v2109
    %2112 = vst.msk [vmem:[#allocation2 + $0x8] sm:$0xff] %vm1833, %v2110
    // Predicated region
    $region30: #{model_embeddings_forward.1} parent=1 // pred_check
      _
    $region31: #{model_embeddings_forward.1} parent=1 // pred_check_branch
      %2114 = sbr.rel (0) target = $region33
    $region32: #{model_embeddings_forward.1} parent=1 // pred_region
      %s2116 = ssub.s32 256, 256
      %2117 = vsyncadd [#allocation3], %s2116
      %s2118 = sshll.u32 [#allocation2], 4
      %s2119 = int_to_ptr.vmem [resolvable:$true] %s2118
      %2124 = dma.vmem_to_hbm [thread:$0]  %s2119, 256, %s7, [#allocation3], 128, 128, 8
    $region33: #{model_embeddings_forward.1} parent=1 // pred_fallthru
      _
    // Predicated region
    $region34: #{model_embeddings_forward.1} parent=1 // pred_check
      _
    $region35: #{model_embeddings_forward.1} parent=1 // pred_check_branch
      %2126 = sbr.rel (0) target = $region37
    $region36: #{model_embeddings_forward.1} parent=1 // pred_region
      %2127 = dma.done [#allocation3], 256
    $region37: #{model_embeddings_forward.1} parent=1 // pred_fallthru
      _
    %2128 = vsyncpa [#allocation3], 1

</llo_original>
